<compile_context>
chip_gen: v6e
topology: v6e:2x2x1
jax: 0.10.0
libtpu: 0.0.40
codegen_flags: <defaults>
</compile_context>

<pallas_src>
import functools

import numpy as np
import jax
import jax.numpy as jnp
from jax.experimental import pallas as pl
from jax.experimental.pallas import tpu as pltpu


# ------------------------------------------------------------------ trace-time helpers

def _spatial_kernel_weights(kernel_size, bandwidth):
    """Row-major flattened k x k spatial Gaussian kernel with the center removed.

    Matches BilateralFilter/SpatialFilter.make_spatial_kernel followed by
    `kernel[kernel > 0]` (center is zeroed, everything else is > 0)."""
    assert bandwidth > 0 and kernel_size % 2 == 1
    p = (kernel_size - 1) // 2
    coords = np.linspace(-p, p, kernel_size, dtype=np.float32)
    X = np.broadcast_to(coords, (kernel_size, kernel_size)).astype(np.float32)
    Y = X.T
    k = np.exp(-(X ** 2 + Y ** 2) / (2.0 * bandwidth ** 2)).astype(np.float32)
    flat = np.delete(k.reshape(-1), kernel_size * kernel_size // 2)
    return [float(v) for v in flat]


def _neighbor_offsets(kernel_size):
    """Neighbor offsets (dh, dw) in the same (flat, center-skipped) order as the
    one-hot kernels of GaussianMask."""
    p = kernel_size // 2
    center = kernel_size * kernel_size // 2
    return [(idx // kernel_size - p, idx % kernel_size - p)
            for idx in range(kernel_size * kernel_size) if idx != center]


# ------------------------------------------------------------------ Pallas kernel

def _mp_kernel(mask_ref, inv_sn_ref, q_ref, i_ref, out_ref, *,
               Cin, nc, HW, shifts, w_alpha, w_gamma, neg_inv_2beta2):
    """Per-batch-element message passing on a lane-dense flattened (HW) layout.

    mask_ref   : (n_off, HW) 1.0 where the shifted neighbor is inside the image, else 0.0
    inv_sn_ref : (1, HW)     precomputed 1 / spatial normalizer (conv of ones)
    q_ref      : (nc,  HW)   Q (flattened spatial dims)
    i_ref      : (Cin, HW)   I (flattened spatial dims)
    out_ref    : (Cin+1, nc, HW) fused output: [0:Cin] bilateral, [Cin] spatial
    """
    Ii = i_ref[...]                     # (Cin, HW) center pixels
    Qi = q_ref[...]                     # (nc, HW)
    M = mask_ref[...]                   # (n_off, HW)

    num = jnp.zeros((Cin, nc, HW), jnp.float32)     # bilateral numerator
    norm = jnp.zeros((Cin, HW), jnp.float32)        # bilateral normalizer
    qtil = jnp.zeros((nc, HW), jnp.float32)         # spatial numerator

    for k, s in enumerate(shifts):
        m = M[k:k + 1, :]                                  # (1, HW)
        # Neighbor values: circular lane rotate + zero out-of-image positions
        # (identical to zero padding in the PyTorch one-hot convs).
        Ij = pltpu.roll(Ii, s, 1) * m                      # (Cin, HW)
        Qj = pltpu.roll(Qi, s, 1) * m                      # (nc, HW)
        d = Ij - Ii
        # Appearance kernel, pre-scaled by the spatial weight (hoisted multiply).
        wK = w_alpha[k] * jnp.exp(d * d * neg_inv_2beta2)  # (Cin, HW)
        num = num + wK[:, None, :] * Qj[None, :, :]        # (Cin, nc, HW)
        norm = norm + wK
        qtil = qtil + w_gamma[k] * Qj

    # Exact reciprocal keeps the 1e-5 tolerance; approx=True would need a Newton step.
    rnorm = pl.reciprocal(norm)                            # (Cin, HW)
    out_ref[0:Cin, :, :] = num * rnorm[:, None, :]
    out_ref[Cin, :, :] = qtil * inv_sn_ref[...]


# ------------------------------------------------------------------ wrapper

def message_passing(Q, I, *, kernel_size=3, theta_alpha=2.0, theta_beta=2.0, theta_gamma=2.0):
    """Pallas implementation of MessagePassing(in_channels, n_classes).forward(Q, I)."""
    B, nc, H, W = Q.shape
    Bi, Cin, Hi, Wi = I.shape
    assert (B, H, W) == (Bi, Hi, Wi)
    HW = H * W                              # lane-dense if HW is a multiple of 128

    offsets = _neighbor_offsets(kernel_size)
    n_off = len(offsets)
    w_a = _spatial_kernel_weights(kernel_size, theta_alpha)
    w_g = _spatial_kernel_weights(kernel_size, theta_gamma)

    # Trace-time constants: validity masks, roll amounts and 1/snorm (data independent).
    hh, ww = np.meshgrid(np.arange(H), np.arange(W), indexing="ij")
    masks = np.zeros((n_off, HW), np.float32)
    snorm = np.zeros((H, W), np.float32)
    shifts = []
    for k, (dh, dw) in enumerate(offsets):
        valid = ((hh + dh >= 0) & (hh + dh < H) & (ww + dw >= 0) & (ww + dw < W))
        masks[k] = valid.reshape(-1).astype(np.float32)
        snorm += np.float32(w_g[k]) * valid.astype(np.float32)
        # neighbor at flat index i + (dh*W + dw) -> roll toward higher indices by -(d) mod HW
        shifts.append((-(dh * W + dw)) % HW)
    inv_snorm = (1.0 / snorm).astype(np.float32).reshape(1, HW)

    # Free reshapes (merge of contiguous trailing dims), no extra HBM pass.
    Qf = Q.astype(jnp.float32).reshape(B, nc, HW)
    If = I.astype(jnp.float32).reshape(B, Cin, HW)

    kernel = functools.partial(
        _mp_kernel, Cin=Cin, nc=nc, HW=HW, shifts=shifts,
        w_alpha=w_a, w_gamma=w_g, neg_inv_2beta2=-1.0 / (2.0 * theta_beta ** 2))

    flops = B * n_off * (2 * Cin * nc * HW + 7 * Cin * HW + 4 * nc * HW) \
        + B * (2 * Cin * nc * HW + Cin * HW + 2 * nc * HW)
    bytes_accessed = 4 * (B * (nc + Cin) * HW + (n_off + 1) * HW + B * (Cin + 1) * nc * HW)

    out = pl.pallas_call(
        kernel,
        out_shape=jax.ShapeDtypeStruct((B, Cin + 1, nc, HW), jnp.float32),
        grid=(B,),
        in_specs=[
            pl.BlockSpec((n_off, HW), lambda b: (0, 0)),
            pl.BlockSpec((1, HW), lambda b: (0, 0)),
            pl.BlockSpec((None, nc, HW), lambda b: (b, 0, 0)),
            pl.BlockSpec((None, Cin, HW), lambda b: (b, 0, 0)),
        ],
        out_specs=pl.BlockSpec((None, Cin + 1, nc, HW), lambda b: (b, 0, 0, 0)),
        compiler_params=pltpu.CompilerParams(dimension_semantics=("parallel",)),
        cost_estimate=pl.CostEstimate(
            flops=int(flops),
            transcendentals=int(B * n_off * Cin * HW),
            bytes_accessed=int(bytes_accessed)),
    )(jnp.asarray(masks), jnp.asarray(inv_snorm), Qf, If)

    # Same as torch.cat([bilateral, spatial.unsqueeze(1)], dim=1), but fused in-kernel.
    return out.reshape(B, Cin + 1, nc, H, W)


# ------------------------------------------------------------------ pure-JAX reference (same math)

def message_passing_ref(Q, I, *, kernel_size=3, theta_alpha=2.0, theta_beta=2.0, theta_gamma=2.0):
    B, nc, H, W = Q.shape
    Cin = I.shape[1]
    pad = kernel_size // 2
    Qp = jnp.pad(Q, ((0, 0), (0, 0), (pad, pad), (pad, pad)))
    Ip = jnp.pad(I, ((0, 0), (0, 0), (pad, pad), (pad, pad)))
    Op = jnp.pad(jnp.ones_like(Q), ((0, 0), (0, 0), (pad, pad), (pad, pad)))
    w_a = _spatial_kernel_weights(kernel_size, theta_alpha)
    w_g = _spatial_kernel_weights(kernel_size, theta_gamma)
    offs = _neighbor_offsets(kernel_size)

    num = jnp.zeros((B, Cin, nc, H, W), jnp.float32)
    norm = jnp.zeros((B, Cin, H, W), jnp.float32)
    qtil = jnp.zeros((B, nc, H, W), jnp.float32)
    snorm = jnp.zeros((B, nc, H, W), jnp.float32)
    for k, (dh, dw) in enumerate(offs):
        Ij = Ip[:, :, pad + dh:pad + dh + H, pad + dw:pad + dw + W]
        Qj = Qp[:, :, pad + dh:pad + dh + H, pad + dw:pad + dw + W]
        Oj = Op[:, :, pad + dh:pad + dh + H, pad + dw:pad + dw + W]
        Kij = jnp.exp(-((Ij - I) ** 2) / (2.0 * theta_beta ** 2))
        num = num + w_a[k] * Kij[:, :, None] * Qj[:, None]
        norm = norm + w_a[k] * Kij
        qtil = qtil + w_g[k] * Qj
        snorm = snorm + w_g[k] * Oj
    bi = num / norm[:, :, None]
    sp = qtil / snorm
    return jnp.concatenate([bi, sp[:, None]], axis=1)


# ------------------------------------------------------------------ main

if __name__ == "__main__":
    key = jax.random.PRNGKey(0)
    kq, ki = jax.random.split(key)

    B, in_channels, n_classes, H, W = 2, 4, 4, 16, 16
    I = jax.random.normal(ki, (B, in_channels, H, W), dtype=jnp.float32)
    Q = jax.nn.softmax(jax.random.normal(kq, (B, n_classes, H, W), dtype=jnp.float32), axis=1)

    out = message_passing(Q, I, kernel_size=3, theta_alpha=2.0, theta_beta=2.0, theta_gamma=2.0)
    out = jax.block_until_ready(out)

    assert out.shape == (B, in_channels + 1, n_classes, H, W), out.shape
    ref = message_passing_ref(Q, I, kernel_size=3, theta_alpha=2.0, theta_beta=2.0, theta_gamma=2.0)
    assert jnp.allclose(out, ref, rtol=1e-5, atol=1e-5), "mismatch vs reference"

    print("KERNEL_OK")
</pallas_src>

<mosaic_0001>
module attributes {stable_mosaic.version = 11 : i64} {
  func.func @_mp_kernel(%arg0: i32, %arg1: memref<8x256xf32, #tpu.memory_space<vmem>>, %arg2: memref<1x256xf32, #tpu.memory_space<vmem>>, %arg3: memref<1x4x256xf32, #tpu.memory_space<vmem>>, %arg4: memref<1x4x256xf32, #tpu.memory_space<vmem>>, %arg5: memref<1x5x4x256xf32, #tpu.memory_space<vmem>>) attributes {dimension_semantics = [#tpu.dimension_semantics<parallel>], iteration_bounds = array<i64: 2>, scalar_prefetch = 0 : i64, scratch_operands = 0 : i64, tpu.core_type = #tpu.core_type<tc>, window_params = [{pipeline_mode = #tpu.pipeline_mode<synchronous>, transform_indices = @transform_0, window_bounds = array<i64: 8, 256>}, {pipeline_mode = #tpu.pipeline_mode<synchronous>, transform_indices = @transform_1, window_bounds = array<i64: 1, 256>}, {transform_indices = @transform_2, window_bounds = array<i64: 1, 4, 256>}, {transform_indices = @transform_3, window_bounds = array<i64: 1, 4, 256>}, {transform_indices = @transform_4, window_bounds = array<i64: 1, 5, 4, 256>}]} {
    %c0 = arith.constant 0 : index
    %c0_0 = arith.constant 0 : index
    %c0_1 = arith.constant 0 : index
    %0 = vector.load %arg4[%c0, %c0_0, %c0_1] : memref<1x4x256xf32, #tpu.memory_space<vmem>>, vector<1x4x256xf32>
    %1 = vector.shape_cast %0 : vector<1x4x256xf32> to vector<4x256xf32>
    %c0_2 = arith.constant 0 : index
    %c0_3 = arith.constant 0 : index
    %c0_4 = arith.constant 0 : index
    %2 = vector.load %arg3[%c0_2, %c0_3, %c0_4] : memref<1x4x256xf32, #tpu.memory_space<vmem>>, vector<1x4x256xf32>
    %3 = vector.shape_cast %2 : vector<1x4x256xf32> to vector<4x256xf32>
    %c0_5 = arith.constant 0 : index
    %c0_6 = arith.constant 0 : index
    %4 = vector.load %arg1[%c0_5, %c0_6] : memref<8x256xf32, #tpu.memory_space<vmem>>, vector<8x256xf32>
    %cst = arith.constant 0.000000e+00 : f32
    %5 = vector.broadcast %cst : f32 to vector<4x4x256xf32>
    %cst_7 = arith.constant 0.000000e+00 : f32
    %6 = vector.broadcast %cst_7 : f32 to vector<4x256xf32>
    %cst_8 = arith.constant 0.000000e+00 : f32
    %7 = vector.broadcast %cst_8 : f32 to vector<4x256xf32>
    %8 = vector.extract_strided_slice %4 {offsets = [0, 0], sizes = [1, 256], strides = [1, 1]} : vector<8x256xf32> to vector<1x256xf32>
    %c17_i32 = arith.constant 17 : i32
    %9 = tpu.dynamic_rotate %1 by %c17_i32 dim 1 : vector<4x256xf32>, i32 -> vector<4x256xf32>
    %10 = vector.broadcast %8 : vector<1x256xf32> to vector<4x256xf32>
    %11 = arith.mulf %9, %10 : vector<4x256xf32>
    %c17_i32_9 = arith.constant 17 : i32
    %12 = tpu.dynamic_rotate %3 by %c17_i32_9 dim 1 : vector<4x256xf32>, i32 -> vector<4x256xf32>
    %13 = vector.broadcast %8 : vector<1x256xf32> to vector<4x256xf32>
    %14 = arith.mulf %12, %13 : vector<4x256xf32>
    %15 = arith.subf %11, %1 : vector<4x256xf32>
    %16 = arith.mulf %15, %15 : vector<4x256xf32>
    %cst_10 = arith.constant -1.250000e-01 : f32
    %17 = vector.broadcast %cst_10 : f32 to vector<4x256xf32>
    %18 = arith.mulf %16, %17 : vector<4x256xf32>
    %19 = math.exp %18 : vector<4x256xf32>
    %cst_11 = arith.constant 0.778800726 : f32
    %20 = vector.broadcast %cst_11 : f32 to vector<4x256xf32>
    %21 = arith.mulf %20, %19 : vector<4x256xf32>
    %22 = vector.shape_cast %21 : vector<4x256xf32> to vector<4x1x256xf32>
    %23 = vector.shape_cast %14 : vector<4x256xf32> to vector<1x4x256xf32>
    %24 = vector.broadcast %22 : vector<4x1x256xf32> to vector<4x4x256xf32>
    %25 = vector.broadcast %23 : vector<1x4x256xf32> to vector<4x4x256xf32>
    %26 = arith.mulf %24, %25 : vector<4x4x256xf32>
    %27 = arith.addf %5, %26 : vector<4x4x256xf32>
    %28 = arith.addf %6, %21 : vector<4x256xf32>
    %cst_12 = arith.constant 0.778800726 : f32
    %29 = vector.broadcast %cst_12 : f32 to vector<4x256xf32>
    %30 = arith.mulf %29, %14 : vector<4x256xf32>
    %31 = arith.addf %7, %30 : vector<4x256xf32>
    %32 = vector.extract_strided_slice %4 {offsets = [1, 0], sizes = [1, 256], strides = [1, 1]} : vector<8x256xf32> to vector<1x256xf32>
    %c16_i32 = arith.constant 16 : i32
    %33 = tpu.dynamic_rotate %1 by %c16_i32 dim 1 : vector<4x256xf32>, i32 -> vector<4x256xf32>
    %34 = vector.broadcast %32 : vector<1x256xf32> to vector<4x256xf32>
    %35 = arith.mulf %33, %34 : vector<4x256xf32>
    %c16_i32_13 = arith.constant 16 : i32
    %36 = tpu.dynamic_rotate %3 by %c16_i32_13 dim 1 : vector<4x256xf32>, i32 -> vector<4x256xf32>
    %37 = vector.broadcast %32 : vector<1x256xf32> to vector<4x256xf32>
    %38 = arith.mulf %36, %37 : vector<4x256xf32>
    %39 = arith.subf %35, %1 : vector<4x256xf32>
    %40 = arith.mulf %39, %39 : vector<4x256xf32>
    %cst_14 = arith.constant -1.250000e-01 : f32
    %41 = vector.broadcast %cst_14 : f32 to vector<4x256xf32>
    %42 = arith.mulf %40, %41 : vector<4x256xf32>
    %43 = math.exp %42 : vector<4x256xf32>
    %cst_15 = arith.constant 0.882496893 : f32
    %44 = vector.broadcast %cst_15 : f32 to vector<4x256xf32>
    %45 = arith.mulf %44, %43 : vector<4x256xf32>
    %46 = vector.shape_cast %45 : vector<4x256xf32> to vector<4x1x256xf32>
    %47 = vector.shape_cast %38 : vector<4x256xf32> to vector<1x4x256xf32>
    %48 = vector.broadcast %46 : vector<4x1x256xf32> to vector<4x4x256xf32>
    %49 = vector.broadcast %47 : vector<1x4x256xf32> to vector<4x4x256xf32>
    %50 = arith.mulf %48, %49 : vector<4x4x256xf32>
    %51 = arith.addf %27, %50 : vector<4x4x256xf32>
    %52 = arith.addf %28, %45 : vector<4x256xf32>
    %cst_16 = arith.constant 0.882496893 : f32
    %53 = vector.broadcast %cst_16 : f32 to vector<4x256xf32>
    %54 = arith.mulf %53, %38 : vector<4x256xf32>
    %55 = arith.addf %31, %54 : vector<4x256xf32>
    %56 = vector.extract_strided_slice %4 {offsets = [2, 0], sizes = [1, 256], strides = [1, 1]} : vector<8x256xf32> to vector<1x256xf32>
    %c15_i32 = arith.constant 15 : i32
    %57 = tpu.dynamic_rotate %1 by %c15_i32 dim 1 : vector<4x256xf32>, i32 -> vector<4x256xf32>
    %58 = vector.broadcast %56 : vector<1x256xf32> to vector<4x256xf32>
    %59 = arith.mulf %57, %58 : vector<4x256xf32>
    %c15_i32_17 = arith.constant 15 : i32
    %60 = tpu.dynamic_rotate %3 by %c15_i32_17 dim 1 : vector<4x256xf32>, i32 -> vector<4x256xf32>
    %61 = vector.broadcast %56 : vector<1x256xf32> to vector<4x256xf32>
    %62 = arith.mulf %60, %61 : vector<4x256xf32>
    %63 = arith.subf %59, %1 : vector<4x256xf32>
    %64 = arith.mulf %63, %63 : vector<4x256xf32>
    %cst_18 = arith.constant -1.250000e-01 : f32
    %65 = vector.broadcast %cst_18 : f32 to vector<4x256xf32>
    %66 = arith.mulf %64, %65 : vector<4x256xf32>
    %67 = math.exp %66 : vector<4x256xf32>
    %cst_19 = arith.constant 0.778800726 : f32
    %68 = vector.broadcast %cst_19 : f32 to vector<4x256xf32>
    %69 = arith.mulf %68, %67 : vector<4x256xf32>
    %70 = vector.shape_cast %69 : vector<4x256xf32> to vector<4x1x256xf32>
    %71 = vector.shape_cast %62 : vector<4x256xf32> to vector<1x4x256xf32>
    %72 = vector.broadcast %70 : vector<4x1x256xf32> to vector<4x4x256xf32>
    %73 = vector.broadcast %71 : vector<1x4x256xf32> to vector<4x4x256xf32>
    %74 = arith.mulf %72, %73 : vector<4x4x256xf32>
    %75 = arith.addf %51, %74 : vector<4x4x256xf32>
    %76 = arith.addf %52, %69 : vector<4x256xf32>
    %cst_20 = arith.constant 0.778800726 : f32
    %77 = vector.broadcast %cst_20 : f32 to vector<4x256xf32>
    %78 = arith.mulf %77, %62 : vector<4x256xf32>
    %79 = arith.addf %55, %78 : vector<4x256xf32>
    %80 = vector.extract_strided_slice %4 {offsets = [3, 0], sizes = [1, 256], strides = [1, 1]} : vector<8x256xf32> to vector<1x256xf32>
    %c1_i32 = arith.constant 1 : i32
    %81 = tpu.dynamic_rotate %1 by %c1_i32 dim 1 : vector<4x256xf32>, i32 -> vector<4x256xf32>
    %82 = vector.broadcast %80 : vector<1x256xf32> to vector<4x256xf32>
    %83 = arith.mulf %81, %82 : vector<4x256xf32>
    %c1_i32_21 = arith.constant 1 : i32
    %84 = tpu.dynamic_rotate %3 by %c1_i32_21 dim 1 : vector<4x256xf32>, i32 -> vector<4x256xf32>
    %85 = vector.broadcast %80 : vector<1x256xf32> to vector<4x256xf32>
    %86 = arith.mulf %84, %85 : vector<4x256xf32>
    %87 = arith.subf %83, %1 : vector<4x256xf32>
    %88 = arith.mulf %87, %87 : vector<4x256xf32>
    %cst_22 = arith.constant -1.250000e-01 : f32
    %89 = vector.broadcast %cst_22 : f32 to vector<4x256xf32>
    %90 = arith.mulf %88, %89 : vector<4x256xf32>
    %91 = math.exp %90 : vector<4x256xf32>
    %cst_23 = arith.constant 0.882496893 : f32
    %92 = vector.broadcast %cst_23 : f32 to vector<4x256xf32>
    %93 = arith.mulf %92, %91 : vector<4x256xf32>
    %94 = vector.shape_cast %93 : vector<4x256xf32> to vector<4x1x256xf32>
    %95 = vector.shape_cast %86 : vector<4x256xf32> to vector<1x4x256xf32>
    %96 = vector.broadcast %94 : vector<4x1x256xf32> to vector<4x4x256xf32>
    %97 = vector.broadcast %95 : vector<1x4x256xf32> to vector<4x4x256xf32>
    %98 = arith.mulf %96, %97 : vector<4x4x256xf32>
    %99 = arith.addf %75, %98 : vector<4x4x256xf32>
    %100 = arith.addf %76, %93 : vector<4x256xf32>
    %cst_24 = arith.constant 0.882496893 : f32
    %101 = vector.broadcast %cst_24 : f32 to vector<4x256xf32>
    %102 = arith.mulf %101, %86 : vector<4x256xf32>
    %103 = arith.addf %79, %102 : vector<4x256xf32>
    %104 = vector.extract_strided_slice %4 {offsets = [4, 0], sizes = [1, 256], strides = [1, 1]} : vector<8x256xf32> to vector<1x256xf32>
    %c255_i32 = arith.constant 255 : i32
    %105 = tpu.dynamic_rotate %1 by %c255_i32 dim 1 : vector<4x256xf32>, i32 -> vector<4x256xf32>
    %106 = vector.broadcast %104 : vector<1x256xf32> to vector<4x256xf32>
    %107 = arith.mulf %105, %106 : vector<4x256xf32>
    %c255_i32_25 = arith.constant 255 : i32
    %108 = tpu.dynamic_rotate %3 by %c255_i32_25 dim 1 : vector<4x256xf32>, i32 -> vector<4x256xf32>
    %109 = vector.broadcast %104 : vector<1x256xf32> to vector<4x256xf32>
    %110 = arith.mulf %108, %109 : vector<4x256xf32>
    %111 = arith.subf %107, %1 : vector<4x256xf32>
    %112 = arith.mulf %111, %111 : vector<4x256xf32>
    %cst_26 = arith.constant -1.250000e-01 : f32
    %113 = vector.broadcast %cst_26 : f32 to vector<4x256xf32>
    %114 = arith.mulf %112, %113 : vector<4x256xf32>
    %115 = math.exp %114 : vector<4x256xf32>
    %cst_27 = arith.constant 0.882496893 : f32
    %116 = vector.broadcast %cst_27 : f32 to vector<4x256xf32>
    %117 = arith.mulf %116, %115 : vector<4x256xf32>
    %118 = vector.shape_cast %117 : vector<4x256xf32> to vector<4x1x256xf32>
    %119 = vector.shape_cast %110 : vector<4x256xf32> to vector<1x4x256xf32>
    %120 = vector.broadcast %118 : vector<4x1x256xf32> to vector<4x4x256xf32>
    %121 = vector.broadcast %119 : vector<1x4x256xf32> to vector<4x4x256xf32>
    %122 = arith.mulf %120, %121 : vector<4x4x256xf32>
    %123 = arith.addf %99, %122 : vector<4x4x256xf32>
    %124 = arith.addf %100, %117 : vector<4x256xf32>
    %cst_28 = arith.constant 0.882496893 : f32
    %125 = vector.broadcast %cst_28 : f32 to vector<4x256xf32>
    %126 = arith.mulf %125, %110 : vector<4x256xf32>
    %127 = arith.addf %103, %126 : vector<4x256xf32>
    %128 = vector.extract_strided_slice %4 {offsets = [5, 0], sizes = [1, 256], strides = [1, 1]} : vector<8x256xf32> to vector<1x256xf32>
    %c241_i32 = arith.constant 241 : i32
    %129 = tpu.dynamic_rotate %1 by %c241_i32 dim 1 : vector<4x256xf32>, i32 -> vector<4x256xf32>
    %130 = vector.broadcast %128 : vector<1x256xf32> to vector<4x256xf32>
    %131 = arith.mulf %129, %130 : vector<4x256xf32>
    %c241_i32_29 = arith.constant 241 : i32
    %132 = tpu.dynamic_rotate %3 by %c241_i32_29 dim 1 : vector<4x256xf32>, i32 -> vector<4x256xf32>
    %133 = vector.broadcast %128 : vector<1x256xf32> to vector<4x256xf32>
    %134 = arith.mulf %132, %133 : vector<4x256xf32>
    %135 = arith.subf %131, %1 : vector<4x256xf32>
    %136 = arith.mulf %135, %135 : vector<4x256xf32>
    %cst_30 = arith.constant -1.250000e-01 : f32
    %137 = vector.broadcast %cst_30 : f32 to vector<4x256xf32>
    %138 = arith.mulf %136, %137 : vector<4x256xf32>
    %139 = math.exp %138 : vector<4x256xf32>
    %cst_31 = arith.constant 0.778800726 : f32
    %140 = vector.broadcast %cst_31 : f32 to vector<4x256xf32>
    %141 = arith.mulf %140, %139 : vector<4x256xf32>
    %142 = vector.shape_cast %141 : vector<4x256xf32> to vector<4x1x256xf32>
    %143 = vector.shape_cast %134 : vector<4x256xf32> to vector<1x4x256xf32>
    %144 = vector.broadcast %142 : vector<4x1x256xf32> to vector<4x4x256xf32>
    %145 = vector.broadcast %143 : vector<1x4x256xf32> to vector<4x4x256xf32>
    %146 = arith.mulf %144, %145 : vector<4x4x256xf32>
    %147 = arith.addf %123, %146 : vector<4x4x256xf32>
    %148 = arith.addf %124, %141 : vector<4x256xf32>
    %cst_32 = arith.constant 0.778800726 : f32
    %149 = vector.broadcast %cst_32 : f32 to vector<4x256xf32>
    %150 = arith.mulf %149, %134 : vector<4x256xf32>
    %151 = arith.addf %127, %150 : vector<4x256xf32>
    %152 = vector.extract_strided_slice %4 {offsets = [6, 0], sizes = [1, 256], strides = [1, 1]} : vector<8x256xf32> to vector<1x256xf32>
    %c240_i32 = arith.constant 240 : i32
    %153 = tpu.dynamic_rotate %1 by %c240_i32 dim 1 : vector<4x256xf32>, i32 -> vector<4x256xf32>
    %154 = vector.broadcast %152 : vector<1x256xf32> to vector<4x256xf32>
    %155 = arith.mulf %153, %154 : vector<4x256xf32>
    %c240_i32_33 = arith.constant 240 : i32
    %156 = tpu.dynamic_rotate %3 by %c240_i32_33 dim 1 : vector<4x256xf32>, i32 -> vector<4x256xf32>
    %157 = vector.broadcast %152 : vector<1x256xf32> to vector<4x256xf32>
    %158 = arith.mulf %156, %157 : vector<4x256xf32>
    %159 = arith.subf %155, %1 : vector<4x256xf32>
    %160 = arith.mulf %159, %159 : vector<4x256xf32>
    %cst_34 = arith.constant -1.250000e-01 : f32
    %161 = vector.broadcast %cst_34 : f32 to vector<4x256xf32>
    %162 = arith.mulf %160, %161 : vector<4x256xf32>
    %163 = math.exp %162 : vector<4x256xf32>
    %cst_35 = arith.constant 0.882496893 : f32
    %164 = vector.broadcast %cst_35 : f32 to vector<4x256xf32>
    %165 = arith.mulf %164, %163 : vector<4x256xf32>
    %166 = vector.shape_cast %165 : vector<4x256xf32> to vector<4x1x256xf32>
    %167 = vector.shape_cast %158 : vector<4x256xf32> to vector<1x4x256xf32>
    %168 = vector.broadcast %166 : vector<4x1x256xf32> to vector<4x4x256xf32>
    %169 = vector.broadcast %167 : vector<1x4x256xf32> to vector<4x4x256xf32>
    %170 = arith.mulf %168, %169 : vector<4x4x256xf32>
    %171 = arith.addf %147, %170 : vector<4x4x256xf32>
    %172 = arith.addf %148, %165 : vector<4x256xf32>
    %cst_36 = arith.constant 0.882496893 : f32
    %173 = vector.broadcast %cst_36 : f32 to vector<4x256xf32>
    %174 = arith.mulf %173, %158 : vector<4x256xf32>
    %175 = arith.addf %151, %174 : vector<4x256xf32>
    %176 = vector.extract_strided_slice %4 {offsets = [7, 0], sizes = [1, 256], strides = [1, 1]} : vector<8x256xf32> to vector<1x256xf32>
    %c239_i32 = arith.constant 239 : i32
    %177 = tpu.dynamic_rotate %1 by %c239_i32 dim 1 : vector<4x256xf32>, i32 -> vector<4x256xf32>
    %178 = vector.broadcast %176 : vector<1x256xf32> to vector<4x256xf32>
    %179 = arith.mulf %177, %178 : vector<4x256xf32>
    %c239_i32_37 = arith.constant 239 : i32
    %180 = tpu.dynamic_rotate %3 by %c239_i32_37 dim 1 : vector<4x256xf32>, i32 -> vector<4x256xf32>
    %181 = vector.broadcast %176 : vector<1x256xf32> to vector<4x256xf32>
    %182 = arith.mulf %180, %181 : vector<4x256xf32>
    %183 = arith.subf %179, %1 : vector<4x256xf32>
    %184 = arith.mulf %183, %183 : vector<4x256xf32>
    %cst_38 = arith.constant -1.250000e-01 : f32
    %185 = vector.broadcast %cst_38 : f32 to vector<4x256xf32>
    %186 = arith.mulf %184, %185 : vector<4x256xf32>
    %187 = math.exp %186 : vector<4x256xf32>
    %cst_39 = arith.constant 0.778800726 : f32
    %188 = vector.broadcast %cst_39 : f32 to vector<4x256xf32>
    %189 = arith.mulf %188, %187 : vector<4x256xf32>
    %190 = vector.shape_cast %189 : vector<4x256xf32> to vector<4x1x256xf32>
    %191 = vector.shape_cast %182 : vector<4x256xf32> to vector<1x4x256xf32>
    %192 = vector.broadcast %190 : vector<4x1x256xf32> to vector<4x4x256xf32>
    %193 = vector.broadcast %191 : vector<1x4x256xf32> to vector<4x4x256xf32>
    %194 = arith.mulf %192, %193 : vector<4x4x256xf32>
    %195 = arith.addf %171, %194 : vector<4x4x256xf32>
    %196 = arith.addf %172, %189 : vector<4x256xf32>
    %cst_40 = arith.constant 0.778800726 : f32
    %197 = vector.broadcast %cst_40 : f32 to vector<4x256xf32>
    %198 = arith.mulf %197, %182 : vector<4x256xf32>
    %199 = arith.addf %175, %198 : vector<4x256xf32>
    %200 = tpu.reciprocal %196 : vector<4x256xf32> -> vector<4x256xf32>
    %201 = vector.shape_cast %200 : vector<4x256xf32> to vector<4x1x256xf32>
    %202 = vector.broadcast %201 : vector<4x1x256xf32> to vector<4x4x256xf32>
    %203 = arith.mulf %195, %202 : vector<4x4x256xf32>
    %c0_41 = arith.constant 0 : index
    %c0_42 = arith.constant 0 : index
    %c0_43 = arith.constant 0 : index
    %c0_44 = arith.constant 0 : index
    %204 = vector.load %arg5[%c0_41, %c0_42, %c0_43, %c0_44] : memref<1x5x4x256xf32, #tpu.memory_space<vmem>>, vector<1x4x4x256xf32>
    %205 = vector.shape_cast %204 : vector<1x4x4x256xf32> to vector<4x4x256xf32>
    %206 = vector.shape_cast %203 : vector<4x4x256xf32> to vector<1x4x4x256xf32>
    tpu.vector_store %arg5[%c0_41, %c0_42, %c0_43, %c0_44], %206 {strides = array<i32>} : memref<1x5x4x256xf32, #tpu.memory_space<vmem>>, vector<1x4x4x256xf32>,
    %c0_45 = arith.constant 0 : index
    %c0_46 = arith.constant 0 : index
    %207 = vector.load %arg2[%c0_45, %c0_46] : memref<1x256xf32, #tpu.memory_space<vmem>>, vector<1x256xf32>
    %208 = vector.broadcast %207 : vector<1x256xf32> to vector<4x256xf32>
    %209 = arith.mulf %199, %208 : vector<4x256xf32>
    %c0_47 = arith.constant 0 : index
    %c4 = arith.constant 4 : index
    %c0_48 = arith.constant 0 : index
    %c0_49 = arith.constant 0 : index
    %210 = vector.load %arg5[%c0_47, %c4, %c0_48, %c0_49] : memref<1x5x4x256xf32, #tpu.memory_space<vmem>>, vector<1x1x4x256xf32>
    %211 = vector.shape_cast %210 : vector<1x1x4x256xf32> to vector<4x256xf32>
    %212 = vector.shape_cast %209 : vector<4x256xf32> to vector<1x1x4x256xf32>
    tpu.vector_store %arg5[%c0_47, %c4, %c0_48, %c0_49], %212 {strides = array<i32>} : memref<1x5x4x256xf32, #tpu.memory_space<vmem>>, vector<1x1x4x256xf32>,
    return
  }
  func.func @transform_0(%arg0: i32) -> (i32, i32) {
    %c0_i32 = arith.constant 0 : i32
    %c0_i32_0 = arith.constant 0 : i32
    %c0_i32_1 = arith.constant 0 : i32
    return %c0_i32, %c0_i32_0 : i32, i32
  }
  func.func @transform_1(%arg0: i32) -> (i32, i32) {
    %c0_i32 = arith.constant 0 : i32
    %c0_i32_0 = arith.constant 0 : i32
    %c0_i32_1 = arith.constant 0 : i32
    return %c0_i32, %c0_i32_0 : i32, i32
  }
  func.func @transform_2(%arg0: i32) -> (i32, i32, i32) {
    %c0_i32 = arith.constant 0 : i32
    %c0_i32_0 = arith.constant 0 : i32
    %c0_i32_1 = arith.constant 0 : i32
    return %arg0, %c0_i32, %c0_i32_0 : i32, i32, i32
  }
  func.func @transform_3(%arg0: i32) -> (i32, i32, i32) {
    %c0_i32 = arith.constant 0 : i32
    %c0_i32_0 = arith.constant 0 : i32
    %c0_i32_1 = arith.constant 0 : i32
    return %arg0, %c0_i32, %c0_i32_0 : i32, i32, i32
  }
  func.func @transform_4(%arg0: i32) -> (i32, i32, i32, i32) {
    %c0_i32 = arith.constant 0 : i32
    %c0_i32_0 = arith.constant 0 : i32
    %c0_i32_1 = arith.constant 0 : i32
    %c0_i32_2 = arith.constant 0 : i32
    return %arg0, %c0_i32, %c0_i32_0, %c0_i32_1 : i32, i32, i32, i32
  }
}

</mosaic_0001>

<llo_original>
// kernel: tpu_custom_call.1
$region0: #{tpu_custom_call.1}
  #allocation0 [shape = 'u32[]', space=smem, size = 0x4, offset = 0x4, fixed_abs, tag = 'smem constant byte address 0x4 - core index']
  #allocation1 [shape = 'u32[144,128]{1,0:T(1,128)}', space=vmem, size = 0x12000, scoped, tag = 'internal scratch']
  %s0 = inlined_call_operand.hbm [shape: f32[8,256], index: 0, kind: input, shape index: {}]
  %s1 = inlined_call_operand.hbm [shape: f32[1,256], index: 1, kind: input, shape index: {}]
  %s2 = inlined_call_operand.hbm [shape: f32[2,4,256], index: 2, kind: input, shape index: {}]
  %s3 = inlined_call_operand.hbm [shape: f32[2,4,256], index: 3, kind: input, shape index: {}]
  %s4 = inlined_call_operand.hbm [shape: f32[2,5,4,256], index: 4, kind: output, shape index: {}]
  %s5 = sld [smem:[#allocation0]]
  $region65: #{tpu_custom_call.1} parent=0
    _
  %s7 = ssub.s32 1, %s5
  %s8 = scalar_select 0, %s7, %s5
  $region1: #{tpu_custom_call.1} parent=0
    #allocation2 [shape = 'u8[8192]{0}', space=vmem, size = 0x2000, scoped, tag = 'input window, operand 0, single buffered']
    #allocation3 [shape = 's32[2]{0}', space=sflag, size = 0x8, scoped, tag = 'scoped memory for tpu_custom_call.1']
    #allocation4 [shape = 's32[2]{0}', space=sflag, size = 0x8, scoped, tag = 'scoped memory for tpu_custom_call.1']
    #allocation5 [shape = 'u8[1024]{0}', space=vmem, size = 0x400, scoped, tag = 'input window, operand 1, single buffered']
    #allocation6 [shape = 's32[1]{0}', space=sflag, size = 0x4, scoped, tag = 'scoped memory for tpu_custom_call.1']
    #allocation7 [shape = 'u8[8192]{0}', space=vmem, size = 0x2000, scoped, tag = 'input window, operand 2']
    #allocation8 [shape = 'u8[8192]{0}', space=vmem, size = 0x2000, scoped, tag = 'input window, operand 3']
    #allocation9 [shape = 'u8[40960]{0}', space=vmem, size = 0xa000, scoped, tag = 'output window, operand 0']
    %9 = vsyncpa [#allocation3], 0
    %10 = vsyncpa [#allocation6], 0
    %11 = vsyncpa [#allocation4], 0
    %s12 = scalar_lea.sflag [#allocation4], 1
    %13 = vsyncpa %s12, 0
    loop: start=0, step=1, limit=4
    $region2: #{tpu_custom_call.1} parent=1 // loop_pre_header
      _
    $region3: #{tpu_custom_call.1} parent=1 // loop_header
      %s15 = sphi 0, %s19
      %p16 = scmp.ge.s32.totalorder %s15, 4
      %s23 = sphi 0, %s23
      %s25 = sphi 0, %s23
      %s26 = sphi 0, %s25
      %s40 = sphi 0, %s26
      %s44 = sphi 0, %s44
      %s46 = sphi 0, %s44
      %s47 = sphi 0, %s46
      %s61 = sphi 0, %s47
      %s67 = sphi 0, %s69
      %s70 = sphi 0, %s67
      %s71 = sphi 0, %s70
      %s87 = sphi 0, %s71
      %s93 = sphi 0, %s95
      %s96 = sphi 0, %s93
      %s97 = sphi 0, %s96
      %s113 = sphi 0, %s97
      %s119 = sphi 0, %s121
      %s122 = sphi 0, %s119
      %s123 = sphi 0, %s122
      %s139 = sphi 0, %s123
    $region4: #{tpu_custom_call.1} parent=1 // loop_header_branch
      %18 = sbr.rel (%p16) target = $region8
    $region5: #{tpu_custom_call.1} parent=1 // loop_body
      %s20 = ssub.s32 %s15, 1
      %s21 = ssub.s32 %s15, 2
      %s22 = sadd.s32 %s15, 1
      %s24 = sadd.s32 %s23, 1
      %p27 = scmp.eq.s32.totalorder %s15, 1
      %p28 = scmp.ne.s32.totalorder %s23, %s25
      %p29 = scmp.eq.s32.totalorder %s15, 0
      %p30 = por %p28, %p29
      %p31 = scmp.ne.s32.totalorder %s23, %s25
      %p32 = scmp.eq.s32.totalorder %s20, 1
      %p33 = por %p31, %p32
      %p34 = scmp.ne.s32.totalorder %s25, %s26
      %p35 = scmp.eq.s32.totalorder %s20, 0
      %p36 = por %p34, %p35
      %p37 = scmp.ne.s32.totalorder %s25, %s26
      %p38 = scmp.eq.s32.totalorder %s21, 1
      %p39 = por %p37, %p38
      %p41 = scmp.ne.s32.totalorder %s26, %s40
      %p42 = scmp.eq.s32.totalorder %s21, 0
      %p43 = por %p41, %p42
      %s45 = sadd.s32 %s44, 1
      %p48 = scmp.eq.s32.totalorder %s15, 1
      %p49 = scmp.ne.s32.totalorder %s44, %s46
      %p50 = scmp.eq.s32.totalorder %s15, 0
      %p51 = por %p49, %p50
      %p52 = scmp.ne.s32.totalorder %s44, %s46
      %p53 = scmp.eq.s32.totalorder %s20, 1
      %p54 = por %p52, %p53
      %p55 = scmp.ne.s32.totalorder %s46, %s47
      %p56 = scmp.eq.s32.totalorder %s20, 0
      %p57 = por %p55, %p56
      %p58 = scmp.ne.s32.totalorder %s46, %s47
      %p59 = scmp.eq.s32.totalorder %s21, 1
      %p60 = por %p58, %p59
      %p62 = scmp.ne.s32.totalorder %s47, %s61
      %p63 = scmp.eq.s32.totalorder %s21, 0
      %p64 = por %p62, %p63
      %s65 = ssub.s32 %s15, %s22
      %p66 = scmp.eq.s32.totalorder %s65, 0
      %s68 = sadd.s32 %s67, 1
      %s69 = scalar_select %p66, %s67, %s68
      %p72 = pneg %p66
      %p73 = scmp.eq.s32.totalorder %s15, 1
      %p74 = por %p72, %p73
      %p75 = scmp.ne.s32.totalorder %s67, %s70
      %p76 = scmp.eq.s32.totalorder %s15, 0
      %p77 = por %p75, %p76
      %p78 = scmp.ne.s32.totalorder %s67, %s70
      %p79 = scmp.eq.s32.totalorder %s20, 1
      %p80 = por %p78, %p79
      %p81 = scmp.ne.s32.totalorder %s70, %s71
      %p82 = scmp.eq.s32.totalorder %s20, 0
      %p83 = por %p81, %p82
      %p84 = scmp.ne.s32.totalorder %s70, %s71
      %p85 = scmp.eq.s32.totalorder %s21, 1
      %p86 = por %p84, %p85
      %p88 = scmp.ne.s32.totalorder %s71, %s87
      %p89 = scmp.eq.s32.totalorder %s21, 0
      %p90 = por %p88, %p89
      %s91 = ssub.s32 %s15, %s22
      %p92 = scmp.eq.s32.totalorder %s91, 0
      %s94 = sadd.s32 %s93, 1
      %s95 = scalar_select %p92, %s93, %s94
      %p98 = pneg %p92
      %p99 = scmp.eq.s32.totalorder %s15, 1
      %p100 = por %p98, %p99
      %p101 = scmp.ne.s32.totalorder %s93, %s96
      %p102 = scmp.eq.s32.totalorder %s15, 0
      %p103 = por %p101, %p102
      %p104 = scmp.ne.s32.totalorder %s93, %s96
      %p105 = scmp.eq.s32.totalorder %s20, 1
      %p106 = por %p104, %p105
      %p107 = scmp.ne.s32.totalorder %s96, %s97
      %p108 = scmp.eq.s32.totalorder %s20, 0
      %p109 = por %p107, %p108
      %p110 = scmp.ne.s32.totalorder %s96, %s97
      %p111 = scmp.eq.s32.totalorder %s21, 1
      %p112 = por %p110, %p111
      %p114 = scmp.ne.s32.totalorder %s97, %s113
      %p115 = scmp.eq.s32.totalorder %s21, 0
      %p116 = por %p114, %p115
      %s117 = ssub.s32 %s15, %s22
      %p118 = scmp.eq.s32.totalorder %s117, 0
      %s120 = sadd.s32 %s119, 1
      %s121 = scalar_select %p118, %s119, %s120
      %p124 = pneg %p118
      %p125 = scmp.eq.s32.totalorder %s15, 1
      %p126 = por %p124, %p125
      %p127 = scmp.ne.s32.totalorder %s119, %s122
      %p128 = scmp.eq.s32.totalorder %s15, 0
      %p129 = por %p127, %p128
      %p130 = scmp.ne.s32.totalorder %s119, %s122
      %p131 = scmp.eq.s32.totalorder %s20, 1
      %p132 = por %p130, %p131
      %p133 = scmp.ne.s32.totalorder %s122, %s123
      %p134 = scmp.eq.s32.totalorder %s20, 0
      %p135 = por %p133, %p134
      %p136 = scmp.ne.s32.totalorder %s122, %s123
      %p137 = scmp.eq.s32.totalorder %s21, 1
      %p138 = por %p136, %p137
      %p140 = scmp.ne.s32.totalorder %s123, %s139
      %p141 = scmp.eq.s32.totalorder %s21, 0
      %p142 = por %p140, %p141
      %p143 = scmp.le.s32.totalorder 1, %s15
      %p144 = scmp.lt.s32.totalorder %s15, 3
      %p145 = pnand %p143, %p144
      %p146 = pneg %p145
      // Predicated region
      $region9: #{tpu_custom_call.1} parent=5 // pred_check
        _
      $region10: #{tpu_custom_call.1} parent=5 // pred_check_branch
        %148 = sbr.rel (%p145) target = $region12
      $region11: #{tpu_custom_call.1} parent=5 // pred_region
        %s149 = ssub.s32 %s15, 1
        // Predicated region
        $region13: #{tpu_custom_call.1} parent=11 // pred_check
          %p150 = pneg %p36
        $region14: #{tpu_custom_call.1} parent=11 // pred_check_branch
          %152 = sbr.rel (%p150) target = $region16
        $region15: #{tpu_custom_call.1} parent=11 // pred_region
          %s154 = ssub.s32 256, 256
          %155 = vsyncadd [#allocation3], %s154
          %s157 = sshll.u32 [#allocation2], 4
          %s158 = int_to_ptr.vmem [resolvable:$true] %s157
          %160 = dma.hbm_to_vmem [thread:$0]  %s0, 256, %s158, [#allocation3]
        $region16: #{tpu_custom_call.1} parent=11 // pred_fallthru
          _
        // Predicated region
        $region17: #{tpu_custom_call.1} parent=11 // pred_check
          %p161 = pneg %p57
        $region18: #{tpu_custom_call.1} parent=11 // pred_check_branch
          %163 = sbr.rel (%p161) target = $region20
        $region19: #{tpu_custom_call.1} parent=11 // pred_region
          %s165 = ssub.s32 32, 32
          %166 = vsyncadd [#allocation6], %s165
          %s168 = sshll.u32 [#allocation5], 4
          %s169 = int_to_ptr.vmem [resolvable:$true] %s168
          %171 = dma.hbm_to_vmem [thread:$0]  %s1, 32, %s169, [#allocation6]
        $region20: #{tpu_custom_call.1} parent=11 // pred_fallthru
          _
      $region12: #{tpu_custom_call.1} parent=5 // pred_fallthru
        _
      %p172 = scmp.lt.s32.totalorder %s15, 2
      // Predicated region
      $region21: #{tpu_custom_call.1} parent=5 // pred_check
        %p173 = pneg %p172
      $region22: #{tpu_custom_call.1} parent=5 // pred_check_branch
        %175 = sbr.rel (%p173) target = $region24
      $region23: #{tpu_custom_call.1} parent=5 // pred_region
        // Predicated region
        $region25: #{tpu_custom_call.1} parent=23 // pred_check
          %p176 = pneg %p77
        $region26: #{tpu_custom_call.1} parent=23 // pred_check_branch
          %178 = sbr.rel (%p176) target = $region28
        $region27: #{tpu_custom_call.1} parent=23 // pred_region
          %s179 = sand.u32 %s15, 1
          %s180 = scalar_lea.sflag [#allocation3], %s179
          %s181 = sand.u32 %s67, 1
          %s182 = smul.addr %s181, 8
          %s183 = scalar_lea.vmem [#allocation7], %s182
          %s185 = ssub.s32 128, 128
          %186 = vsyncadd %s180, %s185
          %s187 = smul.addr %s15, 2
          %s188 = smul.addr %s187, 64
          %s189 = scalar_lea.hbm %s2, %s188
          %s191 = sshll.u32 %s183, 4
          %s192 = int_to_ptr.vmem [resolvable:$true] %s191
          %194 = dma.hbm_to_vmem [thread:$0]  %s189, 128, %s192, %s180
        $region28: #{tpu_custom_call.1} parent=23 // pred_fallthru
          _
        // Predicated region
        $region29: #{tpu_custom_call.1} parent=23 // pred_check
          %p195 = pneg %p103
        $region30: #{tpu_custom_call.1} parent=23 // pred_check_branch
          %197 = sbr.rel (%p195) target = $region32
        $region31: #{tpu_custom_call.1} parent=23 // pred_region
          %s198 = sand.u32 %s15, 1
          %s199 = scalar_lea.sflag [#allocation3], %s198
          %s200 = sand.u32 %s93, 1
          %s201 = smul.addr %s200, 8
          %s202 = scalar_lea.vmem [#allocation8], %s201
          %s204 = ssub.s32 128, 128
          %205 = vsyncadd %s199, %s204
          %s206 = smul.addr %s15, 2
          %s207 = smul.addr %s206, 64
          %s208 = scalar_lea.hbm %s3, %s207
          %s210 = sshll.u32 %s202, 4
          %s211 = int_to_ptr.vmem [resolvable:$true] %s210
          %213 = dma.hbm_to_vmem [thread:$0]  %s208, 128, %s211, %s199
        $region32: #{tpu_custom_call.1} parent=23 // pred_fallthru
          _
      $region24: #{tpu_custom_call.1} parent=5 // pred_fallthru
        _
      %p214 = scmp.le.s32.totalorder 1, %s15
      %p215 = scmp.lt.s32.totalorder %s15, 3
      %p216 = pnand %p214, %p215
      %p217 = pneg %p216
      // Predicated region
      $region33: #{tpu_custom_call.1} parent=5 // pred_check
        _
      $region34: #{tpu_custom_call.1} parent=5 // pred_check_branch
        %219 = sbr.rel (%p216) target = $region36
      $region35: #{tpu_custom_call.1} parent=5 // pred_region
        %s220 = ssub.s32 %s15, 1
        // Predicated region
        $region37: #{tpu_custom_call.1} parent=35 // pred_check
          %p221 = pneg %p36
        $region38: #{tpu_custom_call.1} parent=35 // pred_check_branch
          %223 = sbr.rel (%p221) target = $region40
        $region39: #{tpu_custom_call.1} parent=35 // pred_region
          %224 = dma.done [#allocation3], 256
        $region40: #{tpu_custom_call.1} parent=35 // pred_fallthru
          _
        // Predicated region
        $region41: #{tpu_custom_call.1} parent=35 // pred_check
          %p225 = pneg %p57
        $region42: #{tpu_custom_call.1} parent=35 // pred_check_branch
          %227 = sbr.rel (%p225) target = $region44
        $region43: #{tpu_custom_call.1} parent=35 // pred_region
          %228 = dma.done [#allocation6], 32
        $region44: #{tpu_custom_call.1} parent=35 // pred_fallthru
          _
        %s229 = sand.u32 %s20, 1
        %s230 = scalar_lea.sflag [#allocation3], %s229
        %s231 = sand.u32 %s70, 1
        %s232 = smul.addr %s231, 8
        %s233 = scalar_lea.vmem [#allocation7], %s232
        // Predicated region
        $region45: #{tpu_custom_call.1} parent=35 // pred_check
          %p234 = pneg %p83
        $region46: #{tpu_custom_call.1} parent=35 // pred_check_branch
          %236 = sbr.rel (%p234) target = $region48
        $region47: #{tpu_custom_call.1} parent=35 // pred_region
          %237 = dma.done %s230, 128
        $region48: #{tpu_custom_call.1} parent=35 // pred_fallthru
          _
        %s238 = sand.u32 %s20, 1
        %s239 = scalar_lea.sflag [#allocation3], %s238
        %s240 = sand.u32 %s96, 1
        %s241 = smul.addr %s240, 8
        %s242 = scalar_lea.vmem [#allocation8], %s241
        // Predicated region
        $region49: #{tpu_custom_call.1} parent=35 // pred_check
          %p243 = pneg %p109
        $region50: #{tpu_custom_call.1} parent=35 // pred_check_branch
          %245 = sbr.rel (%p243) target = $region52
        $region51: #{tpu_custom_call.1} parent=35 // pred_region
          %246 = dma.done %s239, 128
        $region52: #{tpu_custom_call.1} parent=35 // pred_fallthru
          _
        %p247 = pneg %p36
        %p248 = pneg %p33
        %p249 = pneg %p57
        %p250 = pneg %p54
        %s251 = sand.u32 %s20, 1
        %s252 = scalar_lea.sflag [#allocation3], %s251
        %s253 = sand.u32 %s70, 1
        %s254 = smul.addr %s253, 8
        %s255 = scalar_lea.vmem [#allocation7], %s254
        %p256 = pneg %p83
        %p257 = pneg %p80
        %s258 = sand.u32 %s20, 1
        %s259 = scalar_lea.sflag [#allocation3], %s258
        %s260 = sand.u32 %s96, 1
        %s261 = smul.addr %s260, 8
        %s262 = scalar_lea.vmem [#allocation8], %s261
        %p263 = pneg %p109
        %p264 = pneg %p106
        %p265 = pneg %p135
        %p266 = pneg %p132
        %s267 = sand.u32 %s122, 1
        %s268 = scalar_lea.sflag [#allocation4], %s267
        %s269 = sand.u32 %s122, 1
        %s270 = smul.addr %s269, 40
        %s271 = scalar_lea.vmem [#allocation9], %s270
        %v272 = vld [vmem:[%s242] sm:$0xff]
        %v273 = vld [vmem:[%s233] sm:$0xff]
        %v274 = vld [vmem:[#allocation2] sm:$0xff]
        %v275 = vld [vmem:[#allocation2 + $0x8] sm:$0xff]
        %v277 = vcombine.high %v272, %v272
        %279 = vrot.lane.b32.xlu0 %v272, 17
        %v280 = vpop.permute.xlu0 %279
        %281 = vrot.lane.b32.xlu0 %v277, 17
        %v282 = vpop.permute.xlu0 %281
        %v283 = vlaneseq
        %v284 = vand.u32 %v283, 127
        %vm285 = vcmp.lt.s32.totalorder %v284, 17
        %v286 = vsel %vm285, %v280, %v282
        %v287 = vsel %vm285, %v282, %v280
        %v288 = vlaneseq
        %v289 = vshrl.u32 %v288, 7
        %v290 = vsub.s32 0, %v289
        %v291 = vrot.slane %v274, %v290
        %v292 = vlaneseq
        %v293 = vshrl.u32 %v292, 7
        %v294 = vsub.s32 0, %v293
        %v295 = vrot.slane %v275, %v294
        %v296 = vmul.f32 %v287, %v291
        %v297 = vmul.f32 %v286, %v295
        %v299 = vcombine.high %v273, %v273
        %301 = vrot.lane.b32.xlu0 %v273, 17
        %v302 = vpop.permute.xlu0 %301
        %303 = vrot.lane.b32.xlu0 %v299, 17
        %v304 = vpop.permute.xlu0 %303
        %v305 = vsel %vm285, %v302, %v304
        %v306 = vsel %vm285, %v304, %v302
        %v307 = vmul.f32 %v306, %v291
        %v308 = vmul.f32 %v305, %v295
        %v309 = vsub.f32 %v296, %v272
        %v310 = vsub.f32 %v297, %v277
        %v311 = vmul.f32 %v309, %v309
        %v312 = vmul.f32 %v310, %v310
        %v313 = vmul.f32 %v311, -0.125
        %v314 = vmul.f32 %v312, -0.125
        %v315 = vmul.f32 %v313, 1.442695
        %v316 = vpow.pop %v315
        %v317 = vmul.f32 %v314, 1.442695
        %v318 = vpow.pop %v317
        %v319 = vmul.f32 %v316, 0.7788007
        %v320 = vmul.f32 %v318, 0.7788007
        %v323 = vcombine.low %v319, %v320
        %v325 = vunpack.c.l.s4 1966171168
        %v326 = vunpack.c.0.s8 %v325
        %v327 = vlaneseq
        %v328 = vshrl.u32 %v327, 7
        %v329 = vsub.s32 %v326, %v328
        %v330 = vrot.slane %v323, %v329
        %v331 = vcombine.high %v330, %v330
        %v333 = vunpack.c.l.s4 1966171168
        %v334 = vunpack.c.0.s8 %v333
        %v335 = vlaneseq
        %v336 = vshrl.u32 %v335, 7
        %v337 = vsub.s32 %v334, %v336
        %v338 = vrot.slane %v330, %v337
        %v340 = vunpack.c.l.s4 1966171168
        %v341 = vunpack.c.0.s8 %v340
        %v342 = vlaneseq
        %v343 = vshrl.u32 %v342, 7
        %v344 = vsub.s32 %v341, %v343
        %v345 = vrot.slane %v331, %v344
        %v346 = vcombine.high %v338, %v338
        %v347 = vcombine.high %v345, %v345
        %v348 = vlaneseq
        %v349 = vshrl.u32 %v348, 7
        %v350 = vsub.s32 0, %v349
        %v351 = vrot.slane %v338, %v350
        %v352 = vlaneseq
        %v353 = vshrl.u32 %v352, 7
        %v354 = vsub.s32 1, %v353
        %v355 = vrot.slane %v338, %v354
        %v356 = vlaneseq
        %v357 = vshrl.u32 %v356, 7
        %v358 = vsub.s32 0, %v357
        %v359 = vrot.slane %v345, %v358
        %v360 = vlaneseq
        %v361 = vshrl.u32 %v360, 7
        %v362 = vsub.s32 1, %v361
        %v363 = vrot.slane %v345, %v362
        %v364 = vlaneseq
        %v365 = vshrl.u32 %v364, 7
        %v366 = vsub.s32 0, %v365
        %v367 = vrot.slane %v346, %v366
        %v368 = vlaneseq
        %v369 = vshrl.u32 %v368, 7
        %v370 = vsub.s32 1, %v369
        %v371 = vrot.slane %v346, %v370
        %v372 = vlaneseq
        %v373 = vshrl.u32 %v372, 7
        %v374 = vsub.s32 0, %v373
        %v375 = vrot.slane %v347, %v374
        %v376 = vlaneseq
        %v377 = vshrl.u32 %v376, 7
        %v378 = vsub.s32 1, %v377
        %v379 = vrot.slane %v347, %v378
        %v388 = vmul.f32 %v351, %v307
        %v389 = vmul.f32 %v355, %v308
        %v390 = vmul.f32 %v359, %v307
        %v391 = vmul.f32 %v363, %v308
        %v392 = vmul.f32 %v367, %v307
        %v393 = vmul.f32 %v371, %v308
        %v394 = vmul.f32 %v375, %v307
        %v395 = vmul.f32 %v379, %v308
        %v396 = vadd.f32 %v388, 0.0
        %v397 = vadd.f32 %v389, 0.0
        %v398 = vadd.f32 %v390, 0.0
        %v399 = vadd.f32 %v391, 0.0
        %v400 = vadd.f32 %v392, 0.0
        %v401 = vadd.f32 %v393, 0.0
        %v402 = vadd.f32 %v394, 0.0
        %v403 = vadd.f32 %v395, 0.0
        %v404 = vadd.f32 %v319, 0.0
        %v405 = vadd.f32 %v320, 0.0
        %v406 = vmul.f32 %v307, 0.7788007
        %v407 = vmul.f32 %v308, 0.7788007
        %v408 = vadd.f32 %v406, 0.0
        %v409 = vadd.f32 %v407, 0.0
        %410 = vrot.lane.b32.xlu0 %v272, 16
        %v411 = vpop.permute.xlu0 %410
        %412 = vrot.lane.b32.xlu0 %v277, 16
        %v413 = vpop.permute.xlu0 %412
        %vm414 = vcmp.lt.s32.totalorder %v284, 16
        %v415 = vsel %vm414, %v411, %v413
        %v416 = vsel %vm414, %v413, %v411
        %v417 = vlaneseq
        %v418 = vshrl.u32 %v417, 7
        %v419 = vsub.s32 1, %v418
        %v420 = vrot.slane %v274, %v419
        %v421 = vlaneseq
        %v422 = vshrl.u32 %v421, 7
        %v423 = vsub.s32 1, %v422
        %v424 = vrot.slane %v275, %v423
        %v425 = vmul.f32 %v416, %v420
        %v426 = vmul.f32 %v415, %v424
        %427 = vrot.lane.b32.xlu0 %v273, 16
        %v428 = vpop.permute.xlu0 %427
        %429 = vrot.lane.b32.xlu0 %v299, 16
        %v430 = vpop.permute.xlu0 %429
        %v431 = vsel %vm414, %v428, %v430
        %v432 = vsel %vm414, %v430, %v428
        %v433 = vmul.f32 %v432, %v420
        %v434 = vmul.f32 %v431, %v424
        %v435 = vsub.f32 %v425, %v272
        %v436 = vsub.f32 %v426, %v277
        %v437 = vmul.f32 %v435, %v435
        %v438 = vmul.f32 %v436, %v436
        %v439 = vmul.f32 %v437, -0.125
        %v440 = vmul.f32 %v438, -0.125
        %v441 = vmul.f32 %v439, 1.442695
        %v442 = vpow.pop %v441
        %v443 = vmul.f32 %v440, 1.442695
        %v444 = vpow.pop %v443
        %v445 = vmul.f32 %v442, 0.8824969
        %v446 = vmul.f32 %v444, 0.8824969
        %v449 = vcombine.low %v445, %v446
        %v451 = vunpack.c.l.s4 1966171168
        %v452 = vunpack.c.0.s8 %v451
        %v453 = vlaneseq
        %v454 = vshrl.u32 %v453, 7
        %v455 = vsub.s32 %v452, %v454
        %v456 = vrot.slane %v449, %v455
        %v457 = vcombine.high %v456, %v456
        %v459 = vunpack.c.l.s4 1966171168
        %v460 = vunpack.c.0.s8 %v459
        %v461 = vlaneseq
        %v462 = vshrl.u32 %v461, 7
        %v463 = vsub.s32 %v460, %v462
        %v464 = vrot.slane %v456, %v463
        %v466 = vunpack.c.l.s4 1966171168
        %v467 = vunpack.c.0.s8 %v466
        %v468 = vlaneseq
        %v469 = vshrl.u32 %v468, 7
        %v470 = vsub.s32 %v467, %v469
        %v471 = vrot.slane %v457, %v470
        %v472 = vcombine.high %v464, %v464
        %v473 = vcombine.high %v471, %v471
        %v474 = vlaneseq
        %v475 = vshrl.u32 %v474, 7
        %v476 = vsub.s32 0, %v475
        %v477 = vrot.slane %v464, %v476
        %v478 = vlaneseq
        %v479 = vshrl.u32 %v478, 7
        %v480 = vsub.s32 1, %v479
        %v481 = vrot.slane %v464, %v480
        %v482 = vlaneseq
        %v483 = vshrl.u32 %v482, 7
        %v484 = vsub.s32 0, %v483
        %v485 = vrot.slane %v471, %v484
        %v486 = vlaneseq
        %v487 = vshrl.u32 %v486, 7
        %v488 = vsub.s32 1, %v487
        %v489 = vrot.slane %v471, %v488
        %v490 = vlaneseq
        %v491 = vshrl.u32 %v490, 7
        %v492 = vsub.s32 0, %v491
        %v493 = vrot.slane %v472, %v492
        %v494 = vlaneseq
        %v495 = vshrl.u32 %v494, 7
        %v496 = vsub.s32 1, %v495
        %v497 = vrot.slane %v472, %v496
        %v498 = vlaneseq
        %v499 = vshrl.u32 %v498, 7
        %v500 = vsub.s32 0, %v499
        %v501 = vrot.slane %v473, %v500
        %v502 = vlaneseq
        %v503 = vshrl.u32 %v502, 7
        %v504 = vsub.s32 1, %v503
        %v505 = vrot.slane %v473, %v504
        %v514 = vmul.f32 %v477, %v433
        %v515 = vmul.f32 %v481, %v434
        %v516 = vmul.f32 %v485, %v433
        %v517 = vmul.f32 %v489, %v434
        %v518 = vmul.f32 %v493, %v433
        %v519 = vmul.f32 %v497, %v434
        %v520 = vmul.f32 %v501, %v433
        %v521 = vmul.f32 %v505, %v434
        %v522 = vadd.f32 %v396, %v514
        %v523 = vadd.f32 %v397, %v515
        %v524 = vadd.f32 %v398, %v516
        %v525 = vadd.f32 %v399, %v517
        %v526 = vadd.f32 %v400, %v518
        %v527 = vadd.f32 %v401, %v519
        %v528 = vadd.f32 %v402, %v520
        %v529 = vadd.f32 %v403, %v521
        %v530 = vadd.f32 %v404, %v445
        %v531 = vadd.f32 %v405, %v446
        %v532 = vmul.f32 %v433, 0.8824969
        %v533 = vmul.f32 %v434, 0.8824969
        %v534 = vadd.f32 %v408, %v532
        %v535 = vadd.f32 %v409, %v533
        %536 = vrot.lane.b32.xlu0 %v272, 15
        %v537 = vpop.permute.xlu0 %536
        %538 = vrot.lane.b32.xlu0 %v277, 15
        %v539 = vpop.permute.xlu0 %538
        %vm540 = vcmp.lt.s32.totalorder %v284, 15
        %v541 = vsel %vm540, %v537, %v539
        %v542 = vsel %vm540, %v539, %v537
        %v543 = vlaneseq
        %v544 = vshrl.u32 %v543, 7
        %v545 = vsub.s32 2, %v544
        %v546 = vrot.slane %v274, %v545
        %v547 = vlaneseq
        %v548 = vshrl.u32 %v547, 7
        %v549 = vsub.s32 2, %v548
        %v550 = vrot.slane %v275, %v549
        %v551 = vmul.f32 %v542, %v546
        %v552 = vmul.f32 %v541, %v550
        %553 = vrot.lane.b32.xlu0 %v273, 15
        %v554 = vpop.permute.xlu0 %553
        %555 = vrot.lane.b32.xlu0 %v299, 15
        %v556 = vpop.permute.xlu0 %555
        %v557 = vsel %vm540, %v554, %v556
        %v558 = vsel %vm540, %v556, %v554
        %v559 = vmul.f32 %v558, %v546
        %v560 = vmul.f32 %v557, %v550
        %v561 = vsub.f32 %v551, %v272
        %v562 = vsub.f32 %v552, %v277
        %v563 = vmul.f32 %v561, %v561
        %v564 = vmul.f32 %v562, %v562
        %v565 = vmul.f32 %v563, -0.125
        %v566 = vmul.f32 %v564, -0.125
        %v567 = vmul.f32 %v565, 1.442695
        %v568 = vpow.pop %v567
        %v569 = vmul.f32 %v566, 1.442695
        %v570 = vpow.pop %v569
        %v571 = vmul.f32 %v568, 0.7788007
        %v572 = vmul.f32 %v570, 0.7788007
        %v575 = vcombine.low %v571, %v572
        %v577 = vunpack.c.l.s4 1966171168
        %v578 = vunpack.c.0.s8 %v577
        %v579 = vlaneseq
        %v580 = vshrl.u32 %v579, 7
        %v581 = vsub.s32 %v578, %v580
        %v582 = vrot.slane %v575, %v581
        %v583 = vcombine.high %v582, %v582
        %v585 = vunpack.c.l.s4 1966171168
        %v586 = vunpack.c.0.s8 %v585
        %v587 = vlaneseq
        %v588 = vshrl.u32 %v587, 7
        %v589 = vsub.s32 %v586, %v588
        %v590 = vrot.slane %v582, %v589
        %v592 = vunpack.c.l.s4 1966171168
        %v593 = vunpack.c.0.s8 %v592
        %v594 = vlaneseq
        %v595 = vshrl.u32 %v594, 7
        %v596 = vsub.s32 %v593, %v595
        %v597 = vrot.slane %v583, %v596
        %v598 = vcombine.high %v590, %v590
        %v599 = vcombine.high %v597, %v597
        %v600 = vlaneseq
        %v601 = vshrl.u32 %v600, 7
        %v602 = vsub.s32 0, %v601
        %v603 = vrot.slane %v590, %v602
        %v604 = vlaneseq
        %v605 = vshrl.u32 %v604, 7
        %v606 = vsub.s32 1, %v605
        %v607 = vrot.slane %v590, %v606
        %v608 = vlaneseq
        %v609 = vshrl.u32 %v608, 7
        %v610 = vsub.s32 0, %v609
        %v611 = vrot.slane %v597, %v610
        %v612 = vlaneseq
        %v613 = vshrl.u32 %v612, 7
        %v614 = vsub.s32 1, %v613
        %v615 = vrot.slane %v597, %v614
        %v616 = vlaneseq
        %v617 = vshrl.u32 %v616, 7
        %v618 = vsub.s32 0, %v617
        %v619 = vrot.slane %v598, %v618
        %v620 = vlaneseq
        %v621 = vshrl.u32 %v620, 7
        %v622 = vsub.s32 1, %v621
        %v623 = vrot.slane %v598, %v622
        %v624 = vlaneseq
        %v625 = vshrl.u32 %v624, 7
        %v626 = vsub.s32 0, %v625
        %v627 = vrot.slane %v599, %v626
        %v628 = vlaneseq
        %v629 = vshrl.u32 %v628, 7
        %v630 = vsub.s32 1, %v629
        %v631 = vrot.slane %v599, %v630
        %v640 = vmul.f32 %v603, %v559
        %v641 = vmul.f32 %v607, %v560
        %v642 = vmul.f32 %v611, %v559
        %v643 = vmul.f32 %v615, %v560
        %v644 = vmul.f32 %v619, %v559
        %v645 = vmul.f32 %v623, %v560
        %v646 = vmul.f32 %v627, %v559
        %v647 = vmul.f32 %v631, %v560
        %v648 = vadd.f32 %v522, %v640
        %v649 = vadd.f32 %v523, %v641
        %v650 = vadd.f32 %v524, %v642
        %v651 = vadd.f32 %v525, %v643
        %v652 = vadd.f32 %v526, %v644
        %v653 = vadd.f32 %v527, %v645
        %v654 = vadd.f32 %v528, %v646
        %v655 = vadd.f32 %v529, %v647
        %v656 = vadd.f32 %v530, %v571
        %v657 = vadd.f32 %v531, %v572
        %v658 = vmul.f32 %v559, 0.7788007
        %v659 = vmul.f32 %v560, 0.7788007
        %v660 = vadd.f32 %v534, %v658
        %v661 = vadd.f32 %v535, %v659
        %662 = vrot.lane.b32.xlu0 %v272, 1
        %v663 = vpop.permute.xlu0 %662
        %664 = vrot.lane.b32.xlu0 %v277, 1
        %v665 = vpop.permute.xlu0 %664
        %vm666 = vcmp.lt.s32.totalorder %v284, 1
        %v667 = vsel %vm666, %v663, %v665
        %v668 = vsel %vm666, %v665, %v663
        %v669 = vlaneseq
        %v670 = vshrl.u32 %v669, 7
        %v671 = vsub.s32 3, %v670
        %v672 = vrot.slane %v274, %v671
        %v673 = vlaneseq
        %v674 = vshrl.u32 %v673, 7
        %v675 = vsub.s32 3, %v674
        %v676 = vrot.slane %v275, %v675
        %v677 = vmul.f32 %v668, %v672
        %v678 = vmul.f32 %v667, %v676
        %679 = vrot.lane.b32.xlu0 %v273, 1
        %v680 = vpop.permute.xlu0 %679
        %681 = vrot.lane.b32.xlu0 %v299, 1
        %v682 = vpop.permute.xlu0 %681
        %v683 = vsel %vm666, %v680, %v682
        %v684 = vsel %vm666, %v682, %v680
        %v685 = vmul.f32 %v684, %v672
        %v686 = vmul.f32 %v683, %v676
        %v687 = vsub.f32 %v677, %v272
        %v688 = vsub.f32 %v678, %v277
        %v689 = vmul.f32 %v687, %v687
        %v690 = vmul.f32 %v688, %v688
        %v691 = vmul.f32 %v689, -0.125
        %v692 = vmul.f32 %v690, -0.125
        %v693 = vmul.f32 %v691, 1.442695
        %v694 = vpow.pop %v693
        %v695 = vmul.f32 %v692, 1.442695
        %v696 = vpow.pop %v695
        %v697 = vmul.f32 %v694, 0.8824969
        %v698 = vmul.f32 %v696, 0.8824969
        %v701 = vcombine.low %v697, %v698
        %v703 = vunpack.c.l.s4 1966171168
        %v704 = vunpack.c.0.s8 %v703
        %v705 = vlaneseq
        %v706 = vshrl.u32 %v705, 7
        %v707 = vsub.s32 %v704, %v706
        %v708 = vrot.slane %v701, %v707
        %v709 = vcombine.high %v708, %v708
        %v711 = vunpack.c.l.s4 1966171168
        %v712 = vunpack.c.0.s8 %v711
        %v713 = vlaneseq
        %v714 = vshrl.u32 %v713, 7
        %v715 = vsub.s32 %v712, %v714
        %v716 = vrot.slane %v708, %v715
        %v718 = vunpack.c.l.s4 1966171168
        %v719 = vunpack.c.0.s8 %v718
        %v720 = vlaneseq
        %v721 = vshrl.u32 %v720, 7
        %v722 = vsub.s32 %v719, %v721
        %v723 = vrot.slane %v709, %v722
        %v724 = vcombine.high %v716, %v716
        %v725 = vcombine.high %v723, %v723
        %v726 = vlaneseq
        %v727 = vshrl.u32 %v726, 7
        %v728 = vsub.s32 0, %v727
        %v729 = vrot.slane %v716, %v728
        %v730 = vlaneseq
        %v731 = vshrl.u32 %v730, 7
        %v732 = vsub.s32 1, %v731
        %v733 = vrot.slane %v716, %v732
        %v734 = vlaneseq
        %v735 = vshrl.u32 %v734, 7
        %v736 = vsub.s32 0, %v735
        %v737 = vrot.slane %v723, %v736
        %v738 = vlaneseq
        %v739 = vshrl.u32 %v738, 7
        %v740 = vsub.s32 1, %v739
        %v741 = vrot.slane %v723, %v740
        %v742 = vlaneseq
        %v743 = vshrl.u32 %v742, 7
        %v744 = vsub.s32 0, %v743
        %v745 = vrot.slane %v724, %v744
        %v746 = vlaneseq
        %v747 = vshrl.u32 %v746, 7
        %v748 = vsub.s32 1, %v747
        %v749 = vrot.slane %v724, %v748
        %v750 = vlaneseq
        %v751 = vshrl.u32 %v750, 7
        %v752 = vsub.s32 0, %v751
        %v753 = vrot.slane %v725, %v752
        %v754 = vlaneseq
        %v755 = vshrl.u32 %v754, 7
        %v756 = vsub.s32 1, %v755
        %v757 = vrot.slane %v725, %v756
        %v766 = vmul.f32 %v729, %v685
        %v767 = vmul.f32 %v733, %v686
        %v768 = vmul.f32 %v737, %v685
        %v769 = vmul.f32 %v741, %v686
        %v770 = vmul.f32 %v745, %v685
        %v771 = vmul.f32 %v749, %v686
        %v772 = vmul.f32 %v753, %v685
        %v773 = vmul.f32 %v757, %v686
        %v774 = vadd.f32 %v648, %v766
        %v775 = vadd.f32 %v649, %v767
        %v776 = vadd.f32 %v650, %v768
        %v777 = vadd.f32 %v651, %v769
        %v778 = vadd.f32 %v652, %v770
        %v779 = vadd.f32 %v653, %v771
        %v780 = vadd.f32 %v654, %v772
        %v781 = vadd.f32 %v655, %v773
        %v782 = vadd.f32 %v656, %v697
        %v783 = vadd.f32 %v657, %v698
        %v784 = vmul.f32 %v685, 0.8824969
        %v785 = vmul.f32 %v686, 0.8824969
        %v786 = vadd.f32 %v660, %v784
        %v787 = vadd.f32 %v661, %v785
        %788 = vrot.lane.b32.xlu0 %v272, 127
        %v789 = vpop.permute.xlu0 %788
        %790 = vrot.lane.b32.xlu0 %v277, 127
        %v791 = vpop.permute.xlu0 %790
        %vm792 = vcmp.lt.s32.totalorder %v284, 127
        %v793 = vsel %vm792, %v789, %v791
        %v794 = vsel %vm792, %v791, %v789
        %v795 = vlaneseq
        %v796 = vshrl.u32 %v795, 7
        %v797 = vsub.s32 4, %v796
        %v798 = vrot.slane %v274, %v797
        %v799 = vlaneseq
        %v800 = vshrl.u32 %v799, 7
        %v801 = vsub.s32 4, %v800
        %v802 = vrot.slane %v275, %v801
        %v803 = vmul.f32 %v793, %v798
        %v804 = vmul.f32 %v794, %v802
        %805 = vrot.lane.b32.xlu0 %v273, 127
        %v806 = vpop.permute.xlu0 %805
        %807 = vrot.lane.b32.xlu0 %v299, 127
        %v808 = vpop.permute.xlu0 %807
        %v809 = vsel %vm792, %v806, %v808
        %v810 = vsel %vm792, %v808, %v806
        %v811 = vmul.f32 %v809, %v798
        %v812 = vmul.f32 %v810, %v802
        %v813 = vsub.f32 %v803, %v272
        %v814 = vsub.f32 %v804, %v277
        %v815 = vmul.f32 %v813, %v813
        %v816 = vmul.f32 %v814, %v814
        %v817 = vmul.f32 %v815, -0.125
        %v818 = vmul.f32 %v816, -0.125
        %v819 = vmul.f32 %v817, 1.442695
        %v820 = vpow.pop %v819
        %v821 = vmul.f32 %v818, 1.442695
        %v822 = vpow.pop %v821
        %v823 = vmul.f32 %v820, 0.8824969
        %v824 = vmul.f32 %v822, 0.8824969
        %v827 = vcombine.low %v823, %v824
        %v829 = vunpack.c.l.s4 1966171168
        %v830 = vunpack.c.0.s8 %v829
        %v831 = vlaneseq
        %v832 = vshrl.u32 %v831, 7
        %v833 = vsub.s32 %v830, %v832
        %v834 = vrot.slane %v827, %v833
        %v835 = vcombine.high %v834, %v834
        %v837 = vunpack.c.l.s4 1966171168
        %v838 = vunpack.c.0.s8 %v837
        %v839 = vlaneseq
        %v840 = vshrl.u32 %v839, 7
        %v841 = vsub.s32 %v838, %v840
        %v842 = vrot.slane %v834, %v841
        %v844 = vunpack.c.l.s4 1966171168
        %v845 = vunpack.c.0.s8 %v844
        %v846 = vlaneseq
        %v847 = vshrl.u32 %v846, 7
        %v848 = vsub.s32 %v845, %v847
        %v849 = vrot.slane %v835, %v848
        %v850 = vcombine.high %v842, %v842
        %v851 = vcombine.high %v849, %v849
        %v852 = vlaneseq
        %v853 = vshrl.u32 %v852, 7
        %v854 = vsub.s32 0, %v853
        %v855 = vrot.slane %v842, %v854
        %v856 = vlaneseq
        %v857 = vshrl.u32 %v856, 7
        %v858 = vsub.s32 1, %v857
        %v859 = vrot.slane %v842, %v858
        %v860 = vlaneseq
        %v861 = vshrl.u32 %v860, 7
        %v862 = vsub.s32 0, %v861
        %v863 = vrot.slane %v849, %v862
        %v864 = vlaneseq
        %v865 = vshrl.u32 %v864, 7
        %v866 = vsub.s32 1, %v865
        %v867 = vrot.slane %v849, %v866
        %v868 = vlaneseq
        %v869 = vshrl.u32 %v868, 7
        %v870 = vsub.s32 0, %v869
        %v871 = vrot.slane %v850, %v870
        %v872 = vlaneseq
        %v873 = vshrl.u32 %v872, 7
        %v874 = vsub.s32 1, %v873
        %v875 = vrot.slane %v850, %v874
        %v876 = vlaneseq
        %v877 = vshrl.u32 %v876, 7
        %v878 = vsub.s32 0, %v877
        %v879 = vrot.slane %v851, %v878
        %v880 = vlaneseq
        %v881 = vshrl.u32 %v880, 7
        %v882 = vsub.s32 1, %v881
        %v883 = vrot.slane %v851, %v882
        %v892 = vmul.f32 %v855, %v811
        %v893 = vmul.f32 %v859, %v812
        %v894 = vmul.f32 %v863, %v811
        %v895 = vmul.f32 %v867, %v812
        %v896 = vmul.f32 %v871, %v811
        %v897 = vmul.f32 %v875, %v812
        %v898 = vmul.f32 %v879, %v811
        %v899 = vmul.f32 %v883, %v812
        %v900 = vadd.f32 %v774, %v892
        %v901 = vadd.f32 %v775, %v893
        %v902 = vadd.f32 %v776, %v894
        %v903 = vadd.f32 %v777, %v895
        %v904 = vadd.f32 %v778, %v896
        %v905 = vadd.f32 %v779, %v897
        %v906 = vadd.f32 %v780, %v898
        %v907 = vadd.f32 %v781, %v899
        %v908 = vadd.f32 %v782, %v823
        %v909 = vadd.f32 %v783, %v824
        %v910 = vmul.f32 %v811, 0.8824969
        %v911 = vmul.f32 %v812, 0.8824969
        %v912 = vadd.f32 %v786, %v910
        %v913 = vadd.f32 %v787, %v911
        %914 = vrot.lane.b32.xlu0 %v272, 113
        %v915 = vpop.permute.xlu0 %914
        %916 = vrot.lane.b32.xlu0 %v277, 113
        %v917 = vpop.permute.xlu0 %916
        %vm918 = vcmp.lt.s32.totalorder %v284, 113
        %v919 = vsel %vm918, %v915, %v917
        %v920 = vsel %vm918, %v917, %v915
        %v921 = vlaneseq
        %v922 = vshrl.u32 %v921, 7
        %v923 = vsub.s32 5, %v922
        %v924 = vrot.slane %v274, %v923
        %v925 = vlaneseq
        %v926 = vshrl.u32 %v925, 7
        %v927 = vsub.s32 5, %v926
        %v928 = vrot.slane %v275, %v927
        %v929 = vmul.f32 %v919, %v924
        %v930 = vmul.f32 %v920, %v928
        %931 = vrot.lane.b32.xlu0 %v273, 113
        %v932 = vpop.permute.xlu0 %931
        %933 = vrot.lane.b32.xlu0 %v299, 113
        %v934 = vpop.permute.xlu0 %933
        %v935 = vsel %vm918, %v932, %v934
        %v936 = vsel %vm918, %v934, %v932
        %v937 = vmul.f32 %v935, %v924
        %v938 = vmul.f32 %v936, %v928
        %v939 = vsub.f32 %v929, %v272
        %v940 = vsub.f32 %v930, %v277
        %v941 = vmul.f32 %v939, %v939
        %v942 = vmul.f32 %v940, %v940
        %v943 = vmul.f32 %v941, -0.125
        %v944 = vmul.f32 %v942, -0.125
        %v945 = vmul.f32 %v943, 1.442695
        %v946 = vpow.pop %v945
        %v947 = vmul.f32 %v944, 1.442695
        %v948 = vpow.pop %v947
        %v949 = vmul.f32 %v946, 0.7788007
        %v950 = vmul.f32 %v948, 0.7788007
        %v953 = vcombine.low %v949, %v950
        %v955 = vunpack.c.l.s4 1966171168
        %v956 = vunpack.c.0.s8 %v955
        %v957 = vlaneseq
        %v958 = vshrl.u32 %v957, 7
        %v959 = vsub.s32 %v956, %v958
        %v960 = vrot.slane %v953, %v959
        %v961 = vcombine.high %v960, %v960
        %v963 = vunpack.c.l.s4 1966171168
        %v964 = vunpack.c.0.s8 %v963
        %v965 = vlaneseq
        %v966 = vshrl.u32 %v965, 7
        %v967 = vsub.s32 %v964, %v966
        %v968 = vrot.slane %v960, %v967
        %v970 = vunpack.c.l.s4 1966171168
        %v971 = vunpack.c.0.s8 %v970
        %v972 = vlaneseq
        %v973 = vshrl.u32 %v972, 7
        %v974 = vsub.s32 %v971, %v973
        %v975 = vrot.slane %v961, %v974
        %v976 = vcombine.high %v968, %v968
        %v977 = vcombine.high %v975, %v975
        %v978 = vlaneseq
        %v979 = vshrl.u32 %v978, 7
        %v980 = vsub.s32 0, %v979
        %v981 = vrot.slane %v968, %v980
        %v982 = vlaneseq
        %v983 = vshrl.u32 %v982, 7
        %v984 = vsub.s32 1, %v983
        %v985 = vrot.slane %v968, %v984
        %v986 = vlaneseq
        %v987 = vshrl.u32 %v986, 7
        %v988 = vsub.s32 0, %v987
        %v989 = vrot.slane %v975, %v988
        %v990 = vlaneseq
        %v991 = vshrl.u32 %v990, 7
        %v992 = vsub.s32 1, %v991
        %v993 = vrot.slane %v975, %v992
        %v994 = vlaneseq
        %v995 = vshrl.u32 %v994, 7
        %v996 = vsub.s32 0, %v995
        %v997 = vrot.slane %v976, %v996
        %v998 = vlaneseq
        %v999 = vshrl.u32 %v998, 7
        %v1000 = vsub.s32 1, %v999
        %v1001 = vrot.slane %v976, %v1000
        %v1002 = vlaneseq
        %v1003 = vshrl.u32 %v1002, 7
        %v1004 = vsub.s32 0, %v1003
        %v1005 = vrot.slane %v977, %v1004
        %v1006 = vlaneseq
        %v1007 = vshrl.u32 %v1006, 7
        %v1008 = vsub.s32 1, %v1007
        %v1009 = vrot.slane %v977, %v1008
        %v1018 = vmul.f32 %v981, %v937
        %v1019 = vmul.f32 %v985, %v938
        %v1020 = vmul.f32 %v989, %v937
        %v1021 = vmul.f32 %v993, %v938
        %v1022 = vmul.f32 %v997, %v937
        %v1023 = vmul.f32 %v1001, %v938
        %v1024 = vmul.f32 %v1005, %v937
        %v1025 = vmul.f32 %v1009, %v938
        %v1026 = vadd.f32 %v900, %v1018
        %v1027 = vadd.f32 %v901, %v1019
        %v1028 = vadd.f32 %v902, %v1020
        %v1029 = vadd.f32 %v903, %v1021
        %v1030 = vadd.f32 %v904, %v1022
        %v1031 = vadd.f32 %v905, %v1023
        %v1032 = vadd.f32 %v906, %v1024
        %v1033 = vadd.f32 %v907, %v1025
        %v1034 = vadd.f32 %v908, %v949
        %v1035 = vadd.f32 %v909, %v950
        %v1036 = vmul.f32 %v937, 0.7788007
        %v1037 = vmul.f32 %v938, 0.7788007
        %v1038 = vadd.f32 %v912, %v1036
        %v1039 = vadd.f32 %v913, %v1037
        %1040 = vrot.lane.b32.xlu0 %v272, 112
        %v1041 = vpop.permute.xlu0 %1040
        %1042 = vrot.lane.b32.xlu0 %v277, 112
        %v1043 = vpop.permute.xlu0 %1042
        %vm1044 = vcmp.lt.s32.totalorder %v284, 112
        %v1045 = vsel %vm1044, %v1041, %v1043
        %v1046 = vsel %vm1044, %v1043, %v1041
        %v1047 = vlaneseq
        %v1048 = vshrl.u32 %v1047, 7
        %v1049 = vsub.s32 6, %v1048
        %v1050 = vrot.slane %v274, %v1049
        %v1051 = vlaneseq
        %v1052 = vshrl.u32 %v1051, 7
        %v1053 = vsub.s32 6, %v1052
        %v1054 = vrot.slane %v275, %v1053
        %v1055 = vmul.f32 %v1045, %v1050
        %v1056 = vmul.f32 %v1046, %v1054
        %1057 = vrot.lane.b32.xlu0 %v273, 112
        %v1058 = vpop.permute.xlu0 %1057
        %1059 = vrot.lane.b32.xlu0 %v299, 112
        %v1060 = vpop.permute.xlu0 %1059
        %v1061 = vsel %vm1044, %v1058, %v1060
        %v1062 = vsel %vm1044, %v1060, %v1058
        %v1063 = vmul.f32 %v1061, %v1050
        %v1064 = vmul.f32 %v1062, %v1054
        %v1065 = vsub.f32 %v1055, %v272
        %v1066 = vsub.f32 %v1056, %v277
        %v1067 = vmul.f32 %v1065, %v1065
        %v1068 = vmul.f32 %v1066, %v1066
        %v1069 = vmul.f32 %v1067, -0.125
        %v1070 = vmul.f32 %v1068, -0.125
        %v1071 = vmul.f32 %v1069, 1.442695
        %v1072 = vpow.pop %v1071
        %v1073 = vmul.f32 %v1070, 1.442695
        %v1074 = vpow.pop %v1073
        %v1075 = vmul.f32 %v1072, 0.8824969
        %v1076 = vmul.f32 %v1074, 0.8824969
        %v1079 = vcombine.low %v1075, %v1076
        %v1081 = vunpack.c.l.s4 1966171168
        %v1082 = vunpack.c.0.s8 %v1081
        %v1083 = vlaneseq
        %v1084 = vshrl.u32 %v1083, 7
        %v1085 = vsub.s32 %v1082, %v1084
        %v1086 = vrot.slane %v1079, %v1085
        %v1087 = vcombine.high %v1086, %v1086
        %v1089 = vunpack.c.l.s4 1966171168
        %v1090 = vunpack.c.0.s8 %v1089
        %v1091 = vlaneseq
        %v1092 = vshrl.u32 %v1091, 7
        %v1093 = vsub.s32 %v1090, %v1092
        %v1094 = vrot.slane %v1086, %v1093
        %v1096 = vunpack.c.l.s4 1966171168
        %v1097 = vunpack.c.0.s8 %v1096
        %v1098 = vlaneseq
        %v1099 = vshrl.u32 %v1098, 7
        %v1100 = vsub.s32 %v1097, %v1099
        %v1101 = vrot.slane %v1087, %v1100
        %v1102 = vcombine.high %v1094, %v1094
        %v1103 = vcombine.high %v1101, %v1101
        %v1104 = vlaneseq
        %v1105 = vshrl.u32 %v1104, 7
        %v1106 = vsub.s32 0, %v1105
        %v1107 = vrot.slane %v1094, %v1106
        %v1108 = vlaneseq
        %v1109 = vshrl.u32 %v1108, 7
        %v1110 = vsub.s32 1, %v1109
        %v1111 = vrot.slane %v1094, %v1110
        %v1112 = vlaneseq
        %v1113 = vshrl.u32 %v1112, 7
        %v1114 = vsub.s32 0, %v1113
        %v1115 = vrot.slane %v1101, %v1114
        %v1116 = vlaneseq
        %v1117 = vshrl.u32 %v1116, 7
        %v1118 = vsub.s32 1, %v1117
        %v1119 = vrot.slane %v1101, %v1118
        %v1120 = vlaneseq
        %v1121 = vshrl.u32 %v1120, 7
        %v1122 = vsub.s32 0, %v1121
        %v1123 = vrot.slane %v1102, %v1122
        %v1124 = vlaneseq
        %v1125 = vshrl.u32 %v1124, 7
        %v1126 = vsub.s32 1, %v1125
        %v1127 = vrot.slane %v1102, %v1126
        %v1128 = vlaneseq
        %v1129 = vshrl.u32 %v1128, 7
        %v1130 = vsub.s32 0, %v1129
        %v1131 = vrot.slane %v1103, %v1130
        %v1132 = vlaneseq
        %v1133 = vshrl.u32 %v1132, 7
        %v1134 = vsub.s32 1, %v1133
        %v1135 = vrot.slane %v1103, %v1134
        %v1144 = vmul.f32 %v1107, %v1063
        %v1145 = vmul.f32 %v1111, %v1064
        %v1146 = vmul.f32 %v1115, %v1063
        %v1147 = vmul.f32 %v1119, %v1064
        %v1148 = vmul.f32 %v1123, %v1063
        %v1149 = vmul.f32 %v1127, %v1064
        %v1150 = vmul.f32 %v1131, %v1063
        %v1151 = vmul.f32 %v1135, %v1064
        %v1152 = vadd.f32 %v1026, %v1144
        %v1153 = vadd.f32 %v1027, %v1145
        %v1154 = vadd.f32 %v1028, %v1146
        %v1155 = vadd.f32 %v1029, %v1147
        %v1156 = vadd.f32 %v1030, %v1148
        %v1157 = vadd.f32 %v1031, %v1149
        %v1158 = vadd.f32 %v1032, %v1150
        %v1159 = vadd.f32 %v1033, %v1151
        %v1160 = vadd.f32 %v1034, %v1075
        %v1161 = vadd.f32 %v1035, %v1076
        %v1162 = vmul.f32 %v1063, 0.8824969
        %v1163 = vmul.f32 %v1064, 0.8824969
        %v1164 = vadd.f32 %v1038, %v1162
        %v1165 = vadd.f32 %v1039, %v1163
        %1166 = vrot.lane.b32.xlu0 %v272, 111
        %v1167 = vpop.permute.xlu0 %1166
        %1168 = vrot.lane.b32.xlu0 %v277, 111
        %v1169 = vpop.permute.xlu0 %1168
        %vm1170 = vcmp.lt.s32.totalorder %v284, 111
        %v1171 = vsel %vm1170, %v1167, %v1169
        %v1172 = vsel %vm1170, %v1169, %v1167
        %v1173 = vlaneseq
        %v1174 = vshrl.u32 %v1173, 7
        %v1175 = vsub.s32 7, %v1174
        %v1176 = vrot.slane %v274, %v1175
        %v1177 = vlaneseq
        %v1178 = vshrl.u32 %v1177, 7
        %v1179 = vsub.s32 7, %v1178
        %v1180 = vrot.slane %v275, %v1179
        %v1181 = vmul.f32 %v1171, %v1176
        %v1182 = vmul.f32 %v1172, %v1180
        %1183 = vrot.lane.b32.xlu0 %v273, 111
        %v1184 = vpop.permute.xlu0 %1183
        %1185 = vrot.lane.b32.xlu0 %v299, 111
        %v1186 = vpop.permute.xlu0 %1185
        %v1187 = vsel %vm1170, %v1184, %v1186
        %v1188 = vsel %vm1170, %v1186, %v1184
        %v1189 = vmul.f32 %v1187, %v1176
        %v1190 = vmul.f32 %v1188, %v1180
        %v1191 = vsub.f32 %v1181, %v272
        %v1192 = vsub.f32 %v1182, %v277
        %v1193 = vmul.f32 %v1191, %v1191
        %v1194 = vmul.f32 %v1192, %v1192
        %v1195 = vmul.f32 %v1193, -0.125
        %v1196 = vmul.f32 %v1194, -0.125
        %v1197 = vmul.f32 %v1195, 1.442695
        %v1198 = vpow.pop %v1197
        %v1199 = vmul.f32 %v1196, 1.442695
        %v1200 = vpow.pop %v1199
        %v1201 = vmul.f32 %v1198, 0.7788007
        %v1202 = vmul.f32 %v1200, 0.7788007
        %v1205 = vcombine.low %v1201, %v1202
        %v1207 = vunpack.c.l.s4 1966171168
        %v1208 = vunpack.c.0.s8 %v1207
        %v1209 = vlaneseq
        %v1210 = vshrl.u32 %v1209, 7
        %v1211 = vsub.s32 %v1208, %v1210
        %v1212 = vrot.slane %v1205, %v1211
        %v1213 = vcombine.high %v1212, %v1212
        %v1215 = vunpack.c.l.s4 1966171168
        %v1216 = vunpack.c.0.s8 %v1215
        %v1217 = vlaneseq
        %v1218 = vshrl.u32 %v1217, 7
        %v1219 = vsub.s32 %v1216, %v1218
        %v1220 = vrot.slane %v1212, %v1219
        %v1222 = vunpack.c.l.s4 1966171168
        %v1223 = vunpack.c.0.s8 %v1222
        %v1224 = vlaneseq
        %v1225 = vshrl.u32 %v1224, 7
        %v1226 = vsub.s32 %v1223, %v1225
        %v1227 = vrot.slane %v1213, %v1226
        %v1228 = vcombine.high %v1220, %v1220
        %v1229 = vcombine.high %v1227, %v1227
        %v1230 = vlaneseq
        %v1231 = vshrl.u32 %v1230, 7
        %v1232 = vsub.s32 0, %v1231
        %v1233 = vrot.slane %v1220, %v1232
        %v1234 = vlaneseq
        %v1235 = vshrl.u32 %v1234, 7
        %v1236 = vsub.s32 1, %v1235
        %v1237 = vrot.slane %v1220, %v1236
        %v1238 = vlaneseq
        %v1239 = vshrl.u32 %v1238, 7
        %v1240 = vsub.s32 0, %v1239
        %v1241 = vrot.slane %v1227, %v1240
        %v1242 = vlaneseq
        %v1243 = vshrl.u32 %v1242, 7
        %v1244 = vsub.s32 1, %v1243
        %v1245 = vrot.slane %v1227, %v1244
        %v1246 = vlaneseq
        %v1247 = vshrl.u32 %v1246, 7
        %v1248 = vsub.s32 0, %v1247
        %v1249 = vrot.slane %v1228, %v1248
        %v1250 = vlaneseq
        %v1251 = vshrl.u32 %v1250, 7
        %v1252 = vsub.s32 1, %v1251
        %v1253 = vrot.slane %v1228, %v1252
        %v1254 = vlaneseq
        %v1255 = vshrl.u32 %v1254, 7
        %v1256 = vsub.s32 0, %v1255
        %v1257 = vrot.slane %v1229, %v1256
        %v1258 = vlaneseq
        %v1259 = vshrl.u32 %v1258, 7
        %v1260 = vsub.s32 1, %v1259
        %v1261 = vrot.slane %v1229, %v1260
        %v1270 = vmul.f32 %v1233, %v1189
        %v1271 = vmul.f32 %v1237, %v1190
        %v1272 = vmul.f32 %v1241, %v1189
        %v1273 = vmul.f32 %v1245, %v1190
        %v1274 = vmul.f32 %v1249, %v1189
        %v1275 = vmul.f32 %v1253, %v1190
        %v1276 = vmul.f32 %v1257, %v1189
        %v1277 = vmul.f32 %v1261, %v1190
        %v1278 = vadd.f32 %v1152, %v1270
        %v1279 = vadd.f32 %v1153, %v1271
        %v1280 = vadd.f32 %v1154, %v1272
        %v1281 = vadd.f32 %v1155, %v1273
        %v1282 = vadd.f32 %v1156, %v1274
        %v1283 = vadd.f32 %v1157, %v1275
        %v1284 = vadd.f32 %v1158, %v1276
        %v1285 = vadd.f32 %v1159, %v1277
        %v1286 = vadd.f32 %v1160, %v1201
        %v1287 = vadd.f32 %v1161, %v1202
        %v1288 = vmul.f32 %v1189, 0.7788007
        %v1289 = vmul.f32 %v1190, 0.7788007
        %v1290 = vadd.f32 %v1164, %v1288
        %v1291 = vadd.f32 %v1165, %v1289
        %v1292 = vrcp.pop %v1286
        %v1293 = vrcp.pop %v1287
        %v1296 = vcombine.low %v1292, %v1293
        %v1298 = vunpack.c.l.s4 1966171168
        %v1299 = vunpack.c.0.s8 %v1298
        %v1300 = vlaneseq
        %v1301 = vshrl.u32 %v1300, 7
        %v1302 = vsub.s32 %v1299, %v1301
        %v1303 = vrot.slane %v1296, %v1302
        %v1304 = vcombine.high %v1303, %v1303
        %v1306 = vunpack.c.l.s4 1966171168
        %v1307 = vunpack.c.0.s8 %v1306
        %v1308 = vlaneseq
        %v1309 = vshrl.u32 %v1308, 7
        %v1310 = vsub.s32 %v1307, %v1309
        %v1311 = vrot.slane %v1303, %v1310
        %v1313 = vunpack.c.l.s4 1966171168
        %v1314 = vunpack.c.0.s8 %v1313
        %v1315 = vlaneseq
        %v1316 = vshrl.u32 %v1315, 7
        %v1317 = vsub.s32 %v1314, %v1316
        %v1318 = vrot.slane %v1304, %v1317
        %v1319 = vcombine.high %v1311, %v1311
        %v1320 = vcombine.high %v1318, %v1318
        %v1321 = vlaneseq
        %v1322 = vshrl.u32 %v1321, 7
        %v1323 = vsub.s32 0, %v1322
        %v1324 = vrot.slane %v1311, %v1323
        %v1325 = vlaneseq
        %v1326 = vshrl.u32 %v1325, 7
        %v1327 = vsub.s32 1, %v1326
        %v1328 = vrot.slane %v1311, %v1327
        %v1329 = vlaneseq
        %v1330 = vshrl.u32 %v1329, 7
        %v1331 = vsub.s32 0, %v1330
        %v1332 = vrot.slane %v1318, %v1331
        %v1333 = vlaneseq
        %v1334 = vshrl.u32 %v1333, 7
        %v1335 = vsub.s32 1, %v1334
        %v1336 = vrot.slane %v1318, %v1335
        %v1337 = vlaneseq
        %v1338 = vshrl.u32 %v1337, 7
        %v1339 = vsub.s32 0, %v1338
        %v1340 = vrot.slane %v1319, %v1339
        %v1341 = vlaneseq
        %v1342 = vshrl.u32 %v1341, 7
        %v1343 = vsub.s32 1, %v1342
        %v1344 = vrot.slane %v1319, %v1343
        %v1345 = vlaneseq
        %v1346 = vshrl.u32 %v1345, 7
        %v1347 = vsub.s32 0, %v1346
        %v1348 = vrot.slane %v1320, %v1347
        %v1349 = vlaneseq
        %v1350 = vshrl.u32 %v1349, 7
        %v1351 = vsub.s32 1, %v1350
        %v1352 = vrot.slane %v1320, %v1351
        %v1361 = vmul.f32 %v1278, %v1324
        %v1362 = vmul.f32 %v1279, %v1328
        %v1363 = vmul.f32 %v1280, %v1332
        %v1364 = vmul.f32 %v1281, %v1336
        %v1365 = vmul.f32 %v1282, %v1340
        %v1366 = vmul.f32 %v1283, %v1344
        %v1367 = vmul.f32 %v1284, %v1348
        %v1368 = vmul.f32 %v1285, %v1352
        %v1377 = vcombine.low %v1361, %v1362
        %v1378 = vcombine.low %v1363, %v1364
        %v1379 = vcombine.low %v1365, %v1366
        %v1380 = vcombine.low %v1367, %v1368
        %1385 = vst [vmem:[%s271] sm:$0xff] %v1377
        %1386 = vst [vmem:[%s271 + $0x8] sm:$0xff] %v1378
        %1387 = vst [vmem:[%s271 + $0x10] sm:$0xff] %v1379
        %1388 = vst [vmem:[%s271 + $0x18] sm:$0xff] %v1380
        %v1389 = vld [vmem:[#allocation5] sm:$0x3]
        %v1391 = vlaneseq
        %v1392 = vshrl.u32 %v1391, 7
        %v1393 = vsub.s32 0, %v1392
        %v1394 = vrot.slane %v1389, %v1393
        %v1395 = vlaneseq
        %v1396 = vshrl.u32 %v1395, 7
        %v1397 = vsub.s32 1, %v1396
        %v1398 = vrot.slane %v1389, %v1397
        %v1401 = vmul.f32 %v1290, %v1394
        %v1402 = vmul.f32 %v1291, %v1398
        %v1405 = vcombine.low %v1401, %v1402
        %s1407 = scalar_lea.vmem %s271, 32 [#allocation9]
        %1408 = vst [vmem:[%s1407] sm:$0xff] %v1405
        %s1409 = sand.u32 %s122, 1
        %s1410 = scalar_lea.sflag [#allocation4], %s1409
        %s1411 = sand.u32 %s122, 1
        %s1412 = smul.addr %s1411, 40
        %s1413 = scalar_lea.vmem [#allocation9], %s1412
        // Predicated region
        $region53: #{tpu_custom_call.1} parent=35 // pred_check
          %p1414 = pneg %p132
        $region54: #{tpu_custom_call.1} parent=35 // pred_check_branch
          %1416 = sbr.rel (%p1414) target = $region56
        $region55: #{tpu_custom_call.1} parent=35 // pred_region
          %s1418 = ssub.s32 640, 640
          %1419 = vsyncadd %s1410, %s1418
          %s1420 = smul.addr %s20, 10
          %s1421 = smul.addr %s1420, 64
          %s1422 = scalar_lea.hbm %s4, %s1421
          %s1423 = sshll.u32 %s1413, 4
          %s1424 = int_to_ptr.vmem [resolvable:$true] %s1423
          %1429 = dma.vmem_to_hbm [thread:$0]  %s1424, 640, %s1422, %s1410, 128, 128, 8
        $region56: #{tpu_custom_call.1} parent=35 // pred_fallthru
          _
      $region36: #{tpu_custom_call.1} parent=5 // pred_fallthru
        _
      %p1430 = scmp.le.s32.totalorder 2, %s15
      // Predicated region
      $region57: #{tpu_custom_call.1} parent=5 // pred_check
        %p1431 = pneg %p1430
      $region58: #{tpu_custom_call.1} parent=5 // pred_check_branch
        %1433 = sbr.rel (%p1431) target = $region60
      $region59: #{tpu_custom_call.1} parent=5 // pred_region
        %s1434 = ssub.s32 %s15, 2
        // Predicated region
        $region61: #{tpu_custom_call.1} parent=59 // pred_check
          %p1435 = pneg %p138
        $region62: #{tpu_custom_call.1} parent=59 // pred_check_branch
          %1437 = sbr.rel (%p1435) target = $region64
        $region63: #{tpu_custom_call.1} parent=59 // pred_region
          %s1438 = sand.u32 %s123, 1
          %s1439 = scalar_lea.sflag [#allocation4], %s1438
          %s1440 = sand.u32 %s123, 1
          %s1441 = smul.addr %s1440, 40
          %s1442 = scalar_lea.vmem [#allocation9], %s1441
          %1443 = dma.done %s1439, 640
        $region64: #{tpu_custom_call.1} parent=59 // pred_fallthru
          _
      $region60: #{tpu_custom_call.1} parent=5 // pred_fallthru
        _
    $region6: #{tpu_custom_call.1} parent=1 // loop_footer
      %s19 = sadd.s32 1, %s15
    $region7: #{tpu_custom_call.1} parent=1 // loop_footer_branch
      %14 = sbr.rel target = $region3
    $region8: #{tpu_custom_call.1} parent=1 // loop_exit
      _
    %1444 = vsyncpa [#allocation3], 1
    %s1445 = scalar_lea.sflag [#allocation3], 1
    %1446 = vsyncpa %s1445, 1
    %1447 = vsyncpa [#allocation6], 1
    %1448 = vsyncpa [#allocation4], 1
    %s1449 = scalar_lea.sflag [#allocation4], 1
    %1450 = vsyncpa %s1449, 1

</llo_original>
